<compile_context>
chip_gen: v5e
topology: v5e:2x2
jax: 0.10.0
libtpu: 0.0.40
codegen_flags: <defaults>
</compile_context>

<pallas_src>
import jax
import jax.numpy as jnp
from jax.experimental import pallas as pl
from jax.experimental.pallas import tpu as pltpu

# ----- small, self-consistent config -----
EMBED = 16            # embed_size
HIDDEN = 32           # hidden_size
VOCAB = 64            # vocab_size
VOCAB_PAD = 128       # lane-dense padded vocab for the final projection / output store
NUM_LAYERS = 2        # num_layers (fixed to 2 in this synthetic kernel)
B = 2                 # batch
CIN = 4               # image channels
IMG = 16              # spatial size
SEQ = 8               # caption length
CF = 32               # stand-in for inception.fc.in_features (2048 in the real model)
KH = KW = 3
OH = OW = IMG - 2     # 'valid' conv
S = OH * OW           # 196
T1 = SEQ + 1          # features prepended to the caption embeddings
KRAW = KH * KW * CIN  # 36
KPAD = 128            # padded im2col contraction dim (lane friendly)

VMEM_SPEC = pl.BlockSpec(memory_space=pltpu.MemorySpace.VMEM)


# ---------------- fused Pallas kernel ----------------

def cnn_to_rnn_kernel(cap_ref,                                    # (SEQ*B, 1) int32
                      patches_ref, convw_ref, convb_ref, fcw_ref, fcb_ref,
                      embed_ref,
                      wih0_ref, whh0_ref, b0_ref,
                      w1_ref, b1_ref,
                      linw_ref, linb_ref,
                      out_ref,                                    # (T1*B, VOCAB_PAD) f32
                      xproj_ref, hid_ref):                        # VMEM scratch
    H = HIDDEN

    # ---- EncoderCNN: fused im2col matmul -> ReLU -> per-image mean pool -> fc -> ReLU
    conv = jnp.dot(patches_ref[...], convw_ref[...],
                   preferred_element_type=jnp.float32) + convb_ref[...]     # (B*S, CF)
    conv = jnp.maximum(conv, 0.0)
    ridx = jax.lax.broadcasted_iota(jnp.int32, (B * S, CF), 0)
    gap_rows = [
        jnp.sum(jnp.where((ridx >= b * S) & (ridx < (b + 1) * S), conv, 0.0),
                axis=0, keepdims=True)
        for b in range(B)                                                   # B = 2
    ]
    gap = jnp.concatenate(gap_rows, axis=0) * (1.0 / S)                     # (B, CF)
    feat = jnp.dot(gap.astype(jnp.bfloat16), fcw_ref[...],
                   preferred_element_type=jnp.float32) + fcb_ref[...]
    feat = jnp.maximum(feat, 0.0)                                           # (B, EMBED)

    # ---- embedding lookup as ONE one-hot matmul (no per-token gathers/stores) ----
    lane_v = jax.lax.broadcasted_iota(jnp.int32, (SEQ * B, VOCAB), 1)
    onehot = (lane_v == cap_ref[...]).astype(jnp.bfloat16)                  # (SEQ*B, VOCAB)
    emb = jnp.dot(onehot, embed_ref[...],
                  preferred_element_type=jnp.float32)                       # (SEQ*B, EMBED)

    # ---- hoisted layer-0 input projection over all T1 steps (bias folded in) ----
    # seq rows are time-major: row = t*B + b; row 0..B-1 = features.
    seq = jnp.concatenate([feat, emb], axis=0).astype(jnp.bfloat16)         # (T1*B, EMBED)
    xproj_ref[...] = jnp.dot(seq, wih0_ref[...],
                             preferred_element_type=jnp.float32) + b0_ref[...]

    # ---- 2-layer LSTM, gate order (i, f, g, o), zero initial state ----
    # i/f/o weight columns & biases were pre-scaled by 0.5 host-side, so a single tanh
    # plus a hoisted affine gives sigmoid for i/f/o lanes and tanh for g lanes at once.
    lane_g = jax.lax.broadcasted_iota(jnp.int32, (B, 4 * H), 1)
    g_mask = (lane_g >= 2 * H) & (lane_g < 3 * H)
    gate_a = jnp.where(g_mask, 1.0, 0.5)
    gate_b = jnp.where(g_mask, 0.0, 0.5)

    whh0 = whh0_ref[...]                 # (H, 4H)  bf16, pre-scaled
    w1 = w1_ref[...]                     # (2H, 4H) bf16, [wih1 ; whh1], pre-scaled
    b1 = b1_ref[...]                     # (1, 4H)  f32,  pre-scaled

    def gates_to_hc(z, c):
        a = gate_a * jnp.tanh(z) + gate_b
        i = a[:, 0:H]
        f = a[:, H:2 * H]
        g = a[:, 2 * H:3 * H]
        o = a[:, 3 * H:4 * H]
        c_new = f * c + i * g
        h_new = o * jnp.tanh(c_new)
        return h_new, c_new

    zeros = jnp.zeros((B, H), jnp.float32)
    h0, c0, h1, c1 = zeros, zeros, zeros, zeros

    # Skewed recurrence: at skewed step s, layer-0 computes step s while layer-1
    # computes step s-1 (consuming h0[s-1], i.e. the value of h0 entering this step).
    # The two halves are data-independent, so their MXU/EUP/VPU chains overlap.
    for s in range(T1 + 1):
        if s >= 1:
            z1 = jnp.dot(jnp.concatenate([h0, h1], axis=1).astype(jnp.bfloat16), w1,
                         preferred_element_type=jnp.float32) + b1
            h1, c1 = gates_to_hc(z1, c1)
            hid_ref[pl.ds((s - 1) * B, B), :] = h1
        if s < T1:
            z0 = xproj_ref[pl.ds(s * B, B), :] + jnp.dot(
                h0.astype(jnp.bfloat16), whh0, preferred_element_type=jnp.float32)
            h0, c0 = gates_to_hc(z0, c0)

    # ---- final vocab projection (lane-dense 128-wide output -> unmasked store) ----
    out_ref[...] = jnp.dot(hid_ref[...].astype(jnp.bfloat16), linw_ref[...],
                           preferred_element_type=jnp.float32) + linb_ref[...]


# ---------------- glue (plain JAX) ----------------

def im2col(x_nhwc):
    """(B, IMG, IMG, CIN) -> (B*OH*OW, KPAD) f32 for a 'valid' 3x3 conv, K zero-padded."""
    cols = []
    for kh in range(KH):
        for kw in range(KW):
            cols.append(x_nhwc[:, kh:kh + OH, kw:kw + OW, :])
    patches = jnp.concatenate(cols, axis=-1)                     # (B, OH, OW, KRAW)
    patches = patches.reshape(B * S, KRAW)
    return jnp.pad(patches, ((0, 0), (0, KPAD - KRAW)))          # (B*S, KPAD)


def init_params(key):
    """PyTorch-like f32 parameters (gate layout i,f,g,o; weights stored transposed)."""
    ks = jax.random.split(key, 13)
    f32 = lambda k, shp: 0.1 * jax.random.normal(k, shp, jnp.float32)
    return {
        "conv_w": f32(ks[0], (KRAW, CF)),           # frozen backbone stand-in
        "conv_b": f32(ks[1], (1, CF)),
        "fc_w":   f32(ks[2], (CF, EMBED)),          # inception.fc
        "fc_b":   f32(ks[3], (1, EMBED)),
        "embed":  f32(ks[4], (VOCAB, EMBED)),
        "wih0":   f32(ks[5], (EMBED, 4 * HIDDEN)),  # torch weight_ih_l0, transposed
        "whh0":   f32(ks[6], (HIDDEN, 4 * HIDDEN)),
        "b0":     f32(ks[7], (1, 4 * HIDDEN)),      # b_ih + b_hh combined
        "wih1":   f32(ks[8], (HIDDEN, 4 * HIDDEN)),
        "whh1":   f32(ks[9], (HIDDEN, 4 * HIDDEN)),
        "b1":     f32(ks[10], (1, 4 * HIDDEN)),
        "lin_w":  f32(ks[11], (HIDDEN, VOCAB)),
        "lin_b":  f32(ks[12], (1, VOCAB)),
    }


def _prescale_gates(w):
    """Scale the sigmoid-gate (i, f, o) columns by 0.5; leave the tanh (g) columns alone.
    Coupled with the in-kernel 'single tanh + affine' gate activation."""
    H = HIDDEN
    scale = jnp.concatenate(
        [jnp.full((1, 2 * H), 0.5, w.dtype),
         jnp.ones((1, H), w.dtype),
         jnp.full((1, H), 0.5, w.dtype)], axis=1)
    return w * scale


def prepare_params(p):
    """One-time host-side prep: bf16 MXU operands, 0.5 gate pre-scale, fused layer-1
    weight [wih1; whh1], zero-padded conv contraction dim and lane-dense (128) output."""
    bf16 = lambda x: x.astype(jnp.bfloat16)
    conv_w = jnp.zeros((KPAD, CF), jnp.float32).at[:KRAW].set(p["conv_w"])
    w1 = jnp.concatenate([p["wih1"], p["whh1"]], axis=0)              # (2H, 4H)
    lin_w = jnp.zeros((HIDDEN, VOCAB_PAD), jnp.float32).at[:, :VOCAB].set(p["lin_w"])
    lin_b = jnp.zeros((1, VOCAB_PAD), jnp.float32).at[:, :VOCAB].set(p["lin_b"])
    return {
        "conv_w": bf16(conv_w),
        "conv_b": p["conv_b"],
        "fc_w":   bf16(p["fc_w"]),
        "fc_b":   p["fc_b"],
        "embed":  bf16(p["embed"]),
        "wih0":   bf16(_prescale_gates(p["wih0"])),
        "whh0":   bf16(_prescale_gates(p["whh0"])),
        "b0":     _prescale_gates(p["b0"]),
        "w1":     bf16(_prescale_gates(w1)),
        "b1":     _prescale_gates(p["b1"]),
        "lin_w":  bf16(lin_w),
        "lin_b":  lin_b,
    }


@jax.jit
def cnn_to_rnn_forward(kp, imgs_nchw, captions):
    x_nhwc = jnp.transpose(imgs_nchw, (0, 2, 3, 1))               # NCHW -> NHWC
    patches = im2col(x_nhwc).astype(jnp.bfloat16)                 # (B*S, KPAD) bf16
    cap = captions.reshape(SEQ * B, 1).astype(jnp.int32)          # time-major indices

    logits = pl.pallas_call(
        cnn_to_rnn_kernel,
        out_shape=jax.ShapeDtypeStruct((T1 * B, VOCAB_PAD), jnp.float32),
        in_specs=[VMEM_SPEC] * 14,
        out_specs=VMEM_SPEC,
        scratch_shapes=[
            pltpu.VMEM((T1 * B, 4 * HIDDEN), jnp.float32),   # hoisted layer-0 xproj
            pltpu.VMEM((T1 * B, HIDDEN), jnp.float32),       # layer-1 hiddens
        ],
    )(cap, patches,
      kp["conv_w"], kp["conv_b"], kp["fc_w"], kp["fc_b"],
      kp["embed"],
      kp["wih0"], kp["whh0"], kp["b0"],
      kp["w1"], kp["b1"],
      kp["lin_w"], kp["lin_b"])
    return logits[:, :VOCAB].reshape(T1, B, VOCAB)                # (SEQ+1, B, VOCAB)


if __name__ == "__main__":
    key = jax.random.PRNGKey(0)
    kparam_key, ki, kc = jax.random.split(key, 3)
    params = init_params(kparam_key)
    kparams = prepare_params(params)                              # one-time host prep
    imgs = jax.random.normal(ki, (B, CIN, IMG, IMG), jnp.float32)        # NCHW, like torch
    captions = jax.random.randint(kc, (SEQ, B), 0, VOCAB, dtype=jnp.int32)

    out = cnn_to_rnn_forward(kparams, imgs, captions)
    jax.block_until_ready(out)
    assert out.shape == (SEQ + 1, B, VOCAB), out.shape
    assert bool(jnp.all(jnp.isfinite(out)))
    print("KERNEL_OK")
</pallas_src>

<mosaic_0001>
module attributes {stable_mosaic.version = 11 : i64} {
  func.func @cnn_to_rnn_kernel(%arg0: memref<16x1xi32, #tpu.memory_space<vmem>>, %arg1: memref<392x128xbf16, #tpu.memory_space<vmem>>, %arg2: memref<128x32xbf16, #tpu.memory_space<vmem>>, %arg3: memref<1x32xf32, #tpu.memory_space<vmem>>, %arg4: memref<32x16xbf16, #tpu.memory_space<vmem>>, %arg5: memref<1x16xf32, #tpu.memory_space<vmem>>, %arg6: memref<64x16xbf16, #tpu.memory_space<vmem>>, %arg7: memref<16x128xbf16, #tpu.memory_space<vmem>>, %arg8: memref<32x128xbf16, #tpu.memory_space<vmem>>, %arg9: memref<1x128xf32, #tpu.memory_space<vmem>>, %arg10: memref<64x128xbf16, #tpu.memory_space<vmem>>, %arg11: memref<1x128xf32, #tpu.memory_space<vmem>>, %arg12: memref<32x128xbf16, #tpu.memory_space<vmem>>, %arg13: memref<1x128xf32, #tpu.memory_space<vmem>>, %arg14: memref<18x128xf32, #tpu.memory_space<vmem>>, %arg15: memref<18x128xf32, #tpu.memory_space<vmem>>, %arg16: memref<18x32xf32, #tpu.memory_space<vmem>>) attributes {dimension_semantics = [], scalar_prefetch = 0 : i64, scratch_operands = 2 : i64, tpu.core_type = #tpu.core_type<tc>} {
    %c0 = arith.constant 0 : index
    %c0_0 = arith.constant 0 : index
    %0 = vector.load %arg1[%c0, %c0_0] : memref<392x128xbf16, #tpu.memory_space<vmem>>, vector<392x128xbf16>
    %c0_1 = arith.constant 0 : index
    %c0_2 = arith.constant 0 : index
    %1 = vector.load %arg2[%c0_1, %c0_2] : memref<128x32xbf16, #tpu.memory_space<vmem>>, vector<128x32xbf16>
    %cst = arith.constant dense<0.000000e+00> : vector<392x32xf32>
    %2 = tpu.matmul %0, %1, %cst {dimension_numbers = #tpu.dot_dimension_numbers<[1], [0], [0], [1], [0, 0, 1, 1], [], []>} : vector<392x128xbf16>, vector<128x32xbf16>, vector<392x32xf32> -> vector<392x32xf32>
    %c0_3 = arith.constant 0 : index
    %c0_4 = arith.constant 0 : index
    %3 = vector.load %arg3[%c0_3, %c0_4] : memref<1x32xf32, #tpu.memory_space<vmem>>, vector<1x32xf32>
    %4 = vector.broadcast %3 : vector<1x32xf32> to vector<392x32xf32>
    %5 = arith.addf %2, %4 : vector<392x32xf32>
    %cst_5 = arith.constant 0.000000e+00 : f32
    %6 = vector.broadcast %cst_5 : f32 to vector<392x32xf32>
    %7 = arith.maximumf %5, %6 : vector<392x32xf32>
    %8 = tpu.iota {dimensions = array<i32: 0>} : vector<392x32xi32>
    %c0_i32 = arith.constant 0 : i32
    %9 = vector.broadcast %c0_i32 : i32 to vector<392x32xi32>
    %10 = arith.cmpi sge, %8, %9 : vector<392x32xi32>
    %c196_i32 = arith.constant 196 : i32
    %11 = vector.broadcast %c196_i32 : i32 to vector<392x32xi32>
    %12 = arith.cmpi slt, %8, %11 : vector<392x32xi32>
    %13 = arith.andi %10, %12 : vector<392x32xi1>
    %cst_6 = arith.constant 0.000000e+00 : f32
    %14 = vector.broadcast %cst_6 : f32 to vector<392x32xf32>
    %15 = arith.select %13, %7, %14 : vector<392x32xi1>, vector<392x32xf32>
    %cst_7 = arith.constant dense<0.000000e+00> : vector<32xf32>
    %16 = vector.multi_reduction <add>, %15, %cst_7 [0] : vector<392x32xf32> to vector<32xf32>
    %17 = vector.shape_cast %16 : vector<32xf32> to vector<1x32xf32>
    %c196_i32_8 = arith.constant 196 : i32
    %18 = vector.broadcast %c196_i32_8 : i32 to vector<392x32xi32>
    %19 = arith.cmpi sge, %8, %18 : vector<392x32xi32>
    %c392_i32 = arith.constant 392 : i32
    %20 = vector.broadcast %c392_i32 : i32 to vector<392x32xi32>
    %21 = arith.cmpi slt, %8, %20 : vector<392x32xi32>
    %22 = arith.andi %19, %21 : vector<392x32xi1>
    %cst_9 = arith.constant 0.000000e+00 : f32
    %23 = vector.broadcast %cst_9 : f32 to vector<392x32xf32>
    %24 = arith.select %22, %7, %23 : vector<392x32xi1>, vector<392x32xf32>
    %cst_10 = arith.constant dense<0.000000e+00> : vector<32xf32>
    %25 = vector.multi_reduction <add>, %24, %cst_10 [0] : vector<392x32xf32> to vector<32xf32>
    %26 = vector.shape_cast %25 : vector<32xf32> to vector<1x32xf32>
    %27 = tpu.concatenate %17, %26 in 0 : vector<1x32xf32>, vector<1x32xf32> -> vector<2x32xf32>
    %cst_11 = arith.constant 0.00510204071 : f32
    %28 = vector.broadcast %cst_11 : f32 to vector<2x32xf32>
    %29 = arith.mulf %27, %28 : vector<2x32xf32>
    %30 = arith.truncf %29 : vector<2x32xf32> to vector<2x32xbf16>
    %c0_12 = arith.constant 0 : index
    %c0_13 = arith.constant 0 : index
    %31 = vector.load %arg4[%c0_12, %c0_13] : memref<32x16xbf16, #tpu.memory_space<vmem>>, vector<32x16xbf16>
    %cst_14 = arith.constant dense<0.000000e+00> : vector<2x16xf32>
    %32 = tpu.matmul %30, %31, %cst_14 {dimension_numbers = #tpu.dot_dimension_numbers<[1], [0], [0], [1], [0, 0, 1, 1], [], []>} : vector<2x32xbf16>, vector<32x16xbf16>, vector<2x16xf32> -> vector<2x16xf32>
    %c0_15 = arith.constant 0 : index
    %c0_16 = arith.constant 0 : index
    %33 = vector.load %arg5[%c0_15, %c0_16] : memref<1x16xf32, #tpu.memory_space<vmem>>, vector<1x16xf32>
    %34 = vector.broadcast %33 : vector<1x16xf32> to vector<2x16xf32>
    %35 = arith.addf %32, %34 : vector<2x16xf32>
    %cst_17 = arith.constant 0.000000e+00 : f32
    %36 = vector.broadcast %cst_17 : f32 to vector<2x16xf32>
    %37 = arith.maximumf %35, %36 : vector<2x16xf32>
    %38 = tpu.iota {dimensions = array<i32: 1>} : vector<16x64xi32>
    %c0_18 = arith.constant 0 : index
    %c0_19 = arith.constant 0 : index
    %39 = vector.load %arg0[%c0_18, %c0_19] : memref<16x1xi32, #tpu.memory_space<vmem>>, vector<16x1xi32>
    %40 = vector.broadcast %39 : vector<16x1xi32> to vector<16x64xi32>
    %41 = arith.cmpi eq, %38, %40 : vector<16x64xi32>
    %42 = arith.extui %41 : vector<16x64xi1> to vector<16x64xi32>
    %43 = arith.sitofp %42 : vector<16x64xi32> to vector<16x64xf32>
    %44 = arith.truncf %43 : vector<16x64xf32> to vector<16x64xbf16>
    %c0_20 = arith.constant 0 : index
    %c0_21 = arith.constant 0 : index
    %45 = vector.load %arg6[%c0_20, %c0_21] : memref<64x16xbf16, #tpu.memory_space<vmem>>, vector<64x16xbf16>
    %cst_22 = arith.constant dense<0.000000e+00> : vector<16x16xf32>
    %46 = tpu.matmul %44, %45, %cst_22 {dimension_numbers = #tpu.dot_dimension_numbers<[1], [0], [0], [1], [0, 0, 1, 1], [], []>} : vector<16x64xbf16>, vector<64x16xbf16>, vector<16x16xf32> -> vector<16x16xf32>
    %47 = tpu.concatenate %37, %46 in 0 : vector<2x16xf32>, vector<16x16xf32> -> vector<18x16xf32>
    %48 = arith.truncf %47 : vector<18x16xf32> to vector<18x16xbf16>
    %c0_23 = arith.constant 0 : index
    %c0_24 = arith.constant 0 : index
    %49 = vector.load %arg7[%c0_23, %c0_24] : memref<16x128xbf16, #tpu.memory_space<vmem>>, vector<16x128xbf16>
    %cst_25 = arith.constant dense<0.000000e+00> : vector<18x128xf32>
    %50 = tpu.matmul %48, %49, %cst_25 {dimension_numbers = #tpu.dot_dimension_numbers<[1], [0], [0], [1], [0, 0, 1, 1], [], []>} : vector<18x16xbf16>, vector<16x128xbf16>, vector<18x128xf32> -> vector<18x128xf32>
    %c0_26 = arith.constant 0 : index
    %c0_27 = arith.constant 0 : index
    %51 = vector.load %arg9[%c0_26, %c0_27] : memref<1x128xf32, #tpu.memory_space<vmem>>, vector<1x128xf32>
    %52 = vector.broadcast %51 : vector<1x128xf32> to vector<18x128xf32>
    %53 = arith.addf %50, %52 : vector<18x128xf32>
    %c0_28 = arith.constant 0 : index
    %c0_29 = arith.constant 0 : index
    %54 = vector.load %arg15[%c0_28, %c0_29] : memref<18x128xf32, #tpu.memory_space<vmem>>, vector<18x128xf32>
    tpu.vector_store %arg15[%c0_28, %c0_29], %53 {strides = array<i32>} : memref<18x128xf32, #tpu.memory_space<vmem>>, vector<18x128xf32>,
    %55 = tpu.iota {dimensions = array<i32: 1>} : vector<2x128xi32>
    %c64_i32 = arith.constant 64 : i32
    %56 = vector.broadcast %c64_i32 : i32 to vector<2x128xi32>
    %57 = arith.cmpi sge, %55, %56 : vector<2x128xi32>
    %c96_i32 = arith.constant 96 : i32
    %58 = vector.broadcast %c96_i32 : i32 to vector<2x128xi32>
    %59 = arith.cmpi slt, %55, %58 : vector<2x128xi32>
    %60 = arith.andi %57, %59 : vector<2x128xi1>
    %cst_30 = arith.constant 1.000000e+00 : f32
    %cst_31 = arith.constant 5.000000e-01 : f32
    %61 = vector.broadcast %cst_30 : f32 to vector<2x128xf32>
    %62 = vector.broadcast %cst_31 : f32 to vector<2x128xf32>
    %63 = arith.select %60, %61, %62 : vector<2x128xi1>, vector<2x128xf32>
    %cst_32 = arith.constant 0.000000e+00 : f32
    %cst_33 = arith.constant 5.000000e-01 : f32
    %64 = vector.broadcast %cst_32 : f32 to vector<2x128xf32>
    %65 = vector.broadcast %cst_33 : f32 to vector<2x128xf32>
    %66 = arith.select %60, %64, %65 : vector<2x128xi1>, vector<2x128xf32>
    %c0_34 = arith.constant 0 : index
    %c0_35 = arith.constant 0 : index
    %67 = vector.load %arg8[%c0_34, %c0_35] : memref<32x128xbf16, #tpu.memory_space<vmem>>, vector<32x128xbf16>
    %c0_36 = arith.constant 0 : index
    %c0_37 = arith.constant 0 : index
    %68 = vector.load %arg10[%c0_36, %c0_37] : memref<64x128xbf16, #tpu.memory_space<vmem>>, vector<64x128xbf16>
    %c0_38 = arith.constant 0 : index
    %c0_39 = arith.constant 0 : index
    %69 = vector.load %arg11[%c0_38, %c0_39] : memref<1x128xf32, #tpu.memory_space<vmem>>, vector<1x128xf32>
    %cst_40 = arith.constant 0.000000e+00 : f32
    %70 = vector.broadcast %cst_40 : f32 to vector<2x32xf32>
    %c0_41 = arith.constant 0 : index
    %c0_42 = arith.constant 0 : index
    %71 = vector.load %arg15[%c0_41, %c0_42] : memref<18x128xf32, #tpu.memory_space<vmem>>, vector<2x128xf32>
    %72 = arith.truncf %70 : vector<2x32xf32> to vector<2x32xbf16>
    %cst_43 = arith.constant dense<0.000000e+00> : vector<2x128xf32>
    %73 = tpu.matmul %72, %67, %cst_43 {dimension_numbers = #tpu.dot_dimension_numbers<[1], [0], [0], [1], [0, 0, 1, 1], [], []>} : vector<2x32xbf16>, vector<32x128xbf16>, vector<2x128xf32> -> vector<2x128xf32>
    %74 = arith.addf %71, %73 : vector<2x128xf32>
    %75 = math.tanh %74 : vector<2x128xf32>
    %76 = arith.mulf %63, %75 : vector<2x128xf32>
    %77 = arith.addf %76, %66 : vector<2x128xf32>
    %78 = vector.extract_strided_slice %77 {offsets = [0, 0], sizes = [2, 32], strides = [1, 1]} : vector<2x128xf32> to vector<2x32xf32>
    %79 = vector.extract_strided_slice %77 {offsets = [0, 32], sizes = [2, 32], strides = [1, 1]} : vector<2x128xf32> to vector<2x32xf32>
    %80 = vector.extract_strided_slice %77 {offsets = [0, 64], sizes = [2, 32], strides = [1, 1]} : vector<2x128xf32> to vector<2x32xf32>
    %81 = vector.extract_strided_slice %77 {offsets = [0, 96], sizes = [2, 32], strides = [1, 1]} : vector<2x128xf32> to vector<2x32xf32>
    %82 = arith.mulf %79, %70 : vector<2x32xf32>
    %83 = arith.mulf %78, %80 : vector<2x32xf32>
    %84 = arith.addf %82, %83 : vector<2x32xf32>
    %85 = math.tanh %84 : vector<2x32xf32>
    %86 = arith.mulf %81, %85 : vector<2x32xf32>
    %87 = tpu.concatenate %86, %70 in 1 : vector<2x32xf32>, vector<2x32xf32> -> vector<2x64xf32>
    %88 = arith.truncf %87 : vector<2x64xf32> to vector<2x64xbf16>
    %cst_44 = arith.constant dense<0.000000e+00> : vector<2x128xf32>
    %89 = tpu.matmul %88, %68, %cst_44 {dimension_numbers = #tpu.dot_dimension_numbers<[1], [0], [0], [1], [0, 0, 1, 1], [], []>} : vector<2x64xbf16>, vector<64x128xbf16>, vector<2x128xf32> -> vector<2x128xf32>
    %90 = vector.broadcast %69 : vector<1x128xf32> to vector<2x128xf32>
    %91 = arith.addf %89, %90 : vector<2x128xf32>
    %92 = math.tanh %91 : vector<2x128xf32>
    %93 = arith.mulf %63, %92 : vector<2x128xf32>
    %94 = arith.addf %93, %66 : vector<2x128xf32>
    %95 = vector.extract_strided_slice %94 {offsets = [0, 0], sizes = [2, 32], strides = [1, 1]} : vector<2x128xf32> to vector<2x32xf32>
    %96 = vector.extract_strided_slice %94 {offsets = [0, 32], sizes = [2, 32], strides = [1, 1]} : vector<2x128xf32> to vector<2x32xf32>
    %97 = vector.extract_strided_slice %94 {offsets = [0, 64], sizes = [2, 32], strides = [1, 1]} : vector<2x128xf32> to vector<2x32xf32>
    %98 = vector.extract_strided_slice %94 {offsets = [0, 96], sizes = [2, 32], strides = [1, 1]} : vector<2x128xf32> to vector<2x32xf32>
    %99 = arith.mulf %96, %70 : vector<2x32xf32>
    %100 = arith.mulf %95, %97 : vector<2x32xf32>
    %101 = arith.addf %99, %100 : vector<2x32xf32>
    %102 = math.tanh %101 : vector<2x32xf32>
    %103 = arith.mulf %98, %102 : vector<2x32xf32>
    %c0_45 = arith.constant 0 : index
    %c0_46 = arith.constant 0 : index
    %104 = vector.load %arg16[%c0_45, %c0_46] : memref<18x32xf32, #tpu.memory_space<vmem>>, vector<2x32xf32>
    tpu.vector_store %arg16[%c0_45, %c0_46], %103 {strides = array<i32>} : memref<18x32xf32, #tpu.memory_space<vmem>>, vector<2x32xf32>,
    %c2 = arith.constant 2 : index
    %c0_47 = arith.constant 0 : index
    %105 = vector.load %arg15[%c2, %c0_47] : memref<18x128xf32, #tpu.memory_space<vmem>>, vector<2x128xf32>
    %106 = arith.truncf %86 : vector<2x32xf32> to vector<2x32xbf16>
    %cst_48 = arith.constant dense<0.000000e+00> : vector<2x128xf32>
    %107 = tpu.matmul %106, %67, %cst_48 {dimension_numbers = #tpu.dot_dimension_numbers<[1], [0], [0], [1], [0, 0, 1, 1], [], []>} : vector<2x32xbf16>, vector<32x128xbf16>, vector<2x128xf32> -> vector<2x128xf32>
    %108 = arith.addf %105, %107 : vector<2x128xf32>
    %109 = math.tanh %108 : vector<2x128xf32>
    %110 = arith.mulf %63, %109 : vector<2x128xf32>
    %111 = arith.addf %110, %66 : vector<2x128xf32>
    %112 = vector.extract_strided_slice %111 {offsets = [0, 0], sizes = [2, 32], strides = [1, 1]} : vector<2x128xf32> to vector<2x32xf32>
    %113 = vector.extract_strided_slice %111 {offsets = [0, 32], sizes = [2, 32], strides = [1, 1]} : vector<2x128xf32> to vector<2x32xf32>
    %114 = vector.extract_strided_slice %111 {offsets = [0, 64], sizes = [2, 32], strides = [1, 1]} : vector<2x128xf32> to vector<2x32xf32>
    %115 = vector.extract_strided_slice %111 {offsets = [0, 96], sizes = [2, 32], strides = [1, 1]} : vector<2x128xf32> to vector<2x32xf32>
    %116 = arith.mulf %113, %84 : vector<2x32xf32>
    %117 = arith.mulf %112, %114 : vector<2x32xf32>
    %118 = arith.addf %116, %117 : vector<2x32xf32>
    %119 = math.tanh %118 : vector<2x32xf32>
    %120 = arith.mulf %115, %119 : vector<2x32xf32>
    %121 = tpu.concatenate %120, %103 in 1 : vector<2x32xf32>, vector<2x32xf32> -> vector<2x64xf32>
    %122 = arith.truncf %121 : vector<2x64xf32> to vector<2x64xbf16>
    %cst_49 = arith.constant dense<0.000000e+00> : vector<2x128xf32>
    %123 = tpu.matmul %122, %68, %cst_49 {dimension_numbers = #tpu.dot_dimension_numbers<[1], [0], [0], [1], [0, 0, 1, 1], [], []>} : vector<2x64xbf16>, vector<64x128xbf16>, vector<2x128xf32> -> vector<2x128xf32>
    %124 = vector.broadcast %69 : vector<1x128xf32> to vector<2x128xf32>
    %125 = arith.addf %123, %124 : vector<2x128xf32>
    %126 = math.tanh %125 : vector<2x128xf32>
    %127 = arith.mulf %63, %126 : vector<2x128xf32>
    %128 = arith.addf %127, %66 : vector<2x128xf32>
    %129 = vector.extract_strided_slice %128 {offsets = [0, 0], sizes = [2, 32], strides = [1, 1]} : vector<2x128xf32> to vector<2x32xf32>
    %130 = vector.extract_strided_slice %128 {offsets = [0, 32], sizes = [2, 32], strides = [1, 1]} : vector<2x128xf32> to vector<2x32xf32>
    %131 = vector.extract_strided_slice %128 {offsets = [0, 64], sizes = [2, 32], strides = [1, 1]} : vector<2x128xf32> to vector<2x32xf32>
    %132 = vector.extract_strided_slice %128 {offsets = [0, 96], sizes = [2, 32], strides = [1, 1]} : vector<2x128xf32> to vector<2x32xf32>
    %133 = arith.mulf %130, %101 : vector<2x32xf32>
    %134 = arith.mulf %129, %131 : vector<2x32xf32>
    %135 = arith.addf %133, %134 : vector<2x32xf32>
    %136 = math.tanh %135 : vector<2x32xf32>
    %137 = arith.mulf %132, %136 : vector<2x32xf32>
    %c2_50 = arith.constant 2 : index
    %c0_51 = arith.constant 0 : index
    %138 = vector.load %arg16[%c2_50, %c0_51] : memref<18x32xf32, #tpu.memory_space<vmem>>, vector<2x32xf32>
    tpu.vector_store %arg16[%c2_50, %c0_51], %137 {strides = array<i32>} : memref<18x32xf32, #tpu.memory_space<vmem>>, vector<2x32xf32>,
    %c4 = arith.constant 4 : index
    %c0_52 = arith.constant 0 : index
    %139 = vector.load %arg15[%c4, %c0_52] : memref<18x128xf32, #tpu.memory_space<vmem>>, vector<2x128xf32>
    %140 = arith.truncf %120 : vector<2x32xf32> to vector<2x32xbf16>
    %cst_53 = arith.constant dense<0.000000e+00> : vector<2x128xf32>
    %141 = tpu.matmul %140, %67, %cst_53 {dimension_numbers = #tpu.dot_dimension_numbers<[1], [0], [0], [1], [0, 0, 1, 1], [], []>} : vector<2x32xbf16>, vector<32x128xbf16>, vector<2x128xf32> -> vector<2x128xf32>
    %142 = arith.addf %139, %141 : vector<2x128xf32>
    %143 = math.tanh %142 : vector<2x128xf32>
    %144 = arith.mulf %63, %143 : vector<2x128xf32>
    %145 = arith.addf %144, %66 : vector<2x128xf32>
    %146 = vector.extract_strided_slice %145 {offsets = [0, 0], sizes = [2, 32], strides = [1, 1]} : vector<2x128xf32> to vector<2x32xf32>
    %147 = vector.extract_strided_slice %145 {offsets = [0, 32], sizes = [2, 32], strides = [1, 1]} : vector<2x128xf32> to vector<2x32xf32>
    %148 = vector.extract_strided_slice %145 {offsets = [0, 64], sizes = [2, 32], strides = [1, 1]} : vector<2x128xf32> to vector<2x32xf32>
    %149 = vector.extract_strided_slice %145 {offsets = [0, 96], sizes = [2, 32], strides = [1, 1]} : vector<2x128xf32> to vector<2x32xf32>
    %150 = arith.mulf %147, %118 : vector<2x32xf32>
    %151 = arith.mulf %146, %148 : vector<2x32xf32>
    %152 = arith.addf %150, %151 : vector<2x32xf32>
    %153 = math.tanh %152 : vector<2x32xf32>
    %154 = arith.mulf %149, %153 : vector<2x32xf32>
    %155 = tpu.concatenate %154, %137 in 1 : vector<2x32xf32>, vector<2x32xf32> -> vector<2x64xf32>
    %156 = arith.truncf %155 : vector<2x64xf32> to vector<2x64xbf16>
    %cst_54 = arith.constant dense<0.000000e+00> : vector<2x128xf32>
    %157 = tpu.matmul %156, %68, %cst_54 {dimension_numbers = #tpu.dot_dimension_numbers<[1], [0], [0], [1], [0, 0, 1, 1], [], []>} : vector<2x64xbf16>, vector<64x128xbf16>, vector<2x128xf32> -> vector<2x128xf32>
    %158 = vector.broadcast %69 : vector<1x128xf32> to vector<2x128xf32>
    %159 = arith.addf %157, %158 : vector<2x128xf32>
    %160 = math.tanh %159 : vector<2x128xf32>
    %161 = arith.mulf %63, %160 : vector<2x128xf32>
    %162 = arith.addf %161, %66 : vector<2x128xf32>
    %163 = vector.extract_strided_slice %162 {offsets = [0, 0], sizes = [2, 32], strides = [1, 1]} : vector<2x128xf32> to vector<2x32xf32>
    %164 = vector.extract_strided_slice %162 {offsets = [0, 32], sizes = [2, 32], strides = [1, 1]} : vector<2x128xf32> to vector<2x32xf32>
    %165 = vector.extract_strided_slice %162 {offsets = [0, 64], sizes = [2, 32], strides = [1, 1]} : vector<2x128xf32> to vector<2x32xf32>
    %166 = vector.extract_strided_slice %162 {offsets = [0, 96], sizes = [2, 32], strides = [1, 1]} : vector<2x128xf32> to vector<2x32xf32>
    %167 = arith.mulf %164, %135 : vector<2x32xf32>
    %168 = arith.mulf %163, %165 : vector<2x32xf32>
    %169 = arith.addf %167, %168 : vector<2x32xf32>
    %170 = math.tanh %169 : vector<2x32xf32>
    %171 = arith.mulf %166, %170 : vector<2x32xf32>
    %c4_55 = arith.constant 4 : index
    %c0_56 = arith.constant 0 : index
    %172 = vector.load %arg16[%c4_55, %c0_56] : memref<18x32xf32, #tpu.memory_space<vmem>>, vector<2x32xf32>
    tpu.vector_store %arg16[%c4_55, %c0_56], %171 {strides = array<i32>} : memref<18x32xf32, #tpu.memory_space<vmem>>, vector<2x32xf32>,
    %c6 = arith.constant 6 : index
    %c0_57 = arith.constant 0 : index
    %173 = vector.load %arg15[%c6, %c0_57] : memref<18x128xf32, #tpu.memory_space<vmem>>, vector<2x128xf32>
    %174 = arith.truncf %154 : vector<2x32xf32> to vector<2x32xbf16>
    %cst_58 = arith.constant dense<0.000000e+00> : vector<2x128xf32>
    %175 = tpu.matmul %174, %67, %cst_58 {dimension_numbers = #tpu.dot_dimension_numbers<[1], [0], [0], [1], [0, 0, 1, 1], [], []>} : vector<2x32xbf16>, vector<32x128xbf16>, vector<2x128xf32> -> vector<2x128xf32>
    %176 = arith.addf %173, %175 : vector<2x128xf32>
    %177 = math.tanh %176 : vector<2x128xf32>
    %178 = arith.mulf %63, %177 : vector<2x128xf32>
    %179 = arith.addf %178, %66 : vector<2x128xf32>
    %180 = vector.extract_strided_slice %179 {offsets = [0, 0], sizes = [2, 32], strides = [1, 1]} : vector<2x128xf32> to vector<2x32xf32>
    %181 = vector.extract_strided_slice %179 {offsets = [0, 32], sizes = [2, 32], strides = [1, 1]} : vector<2x128xf32> to vector<2x32xf32>
    %182 = vector.extract_strided_slice %179 {offsets = [0, 64], sizes = [2, 32], strides = [1, 1]} : vector<2x128xf32> to vector<2x32xf32>
    %183 = vector.extract_strided_slice %179 {offsets = [0, 96], sizes = [2, 32], strides = [1, 1]} : vector<2x128xf32> to vector<2x32xf32>
    %184 = arith.mulf %181, %152 : vector<2x32xf32>
    %185 = arith.mulf %180, %182 : vector<2x32xf32>
    %186 = arith.addf %184, %185 : vector<2x32xf32>
    %187 = math.tanh %186 : vector<2x32xf32>
    %188 = arith.mulf %183, %187 : vector<2x32xf32>
    %189 = tpu.concatenate %188, %171 in 1 : vector<2x32xf32>, vector<2x32xf32> -> vector<2x64xf32>
    %190 = arith.truncf %189 : vector<2x64xf32> to vector<2x64xbf16>
    %cst_59 = arith.constant dense<0.000000e+00> : vector<2x128xf32>
    %191 = tpu.matmul %190, %68, %cst_59 {dimension_numbers = #tpu.dot_dimension_numbers<[1], [0], [0], [1], [0, 0, 1, 1], [], []>} : vector<2x64xbf16>, vector<64x128xbf16>, vector<2x128xf32> -> vector<2x128xf32>
    %192 = vector.broadcast %69 : vector<1x128xf32> to vector<2x128xf32>
    %193 = arith.addf %191, %192 : vector<2x128xf32>
    %194 = math.tanh %193 : vector<2x128xf32>
    %195 = arith.mulf %63, %194 : vector<2x128xf32>
    %196 = arith.addf %195, %66 : vector<2x128xf32>
    %197 = vector.extract_strided_slice %196 {offsets = [0, 0], sizes = [2, 32], strides = [1, 1]} : vector<2x128xf32> to vector<2x32xf32>
    %198 = vector.extract_strided_slice %196 {offsets = [0, 32], sizes = [2, 32], strides = [1, 1]} : vector<2x128xf32> to vector<2x32xf32>
    %199 = vector.extract_strided_slice %196 {offsets = [0, 64], sizes = [2, 32], strides = [1, 1]} : vector<2x128xf32> to vector<2x32xf32>
    %200 = vector.extract_strided_slice %196 {offsets = [0, 96], sizes = [2, 32], strides = [1, 1]} : vector<2x128xf32> to vector<2x32xf32>
    %201 = arith.mulf %198, %169 : vector<2x32xf32>
    %202 = arith.mulf %197, %199 : vector<2x32xf32>
    %203 = arith.addf %201, %202 : vector<2x32xf32>
    %204 = math.tanh %203 : vector<2x32xf32>
    %205 = arith.mulf %200, %204 : vector<2x32xf32>
    %c6_60 = arith.constant 6 : index
    %c0_61 = arith.constant 0 : index
    %206 = vector.load %arg16[%c6_60, %c0_61] : memref<18x32xf32, #tpu.memory_space<vmem>>, vector<2x32xf32>
    tpu.vector_store %arg16[%c6_60, %c0_61], %205 {strides = array<i32>} : memref<18x32xf32, #tpu.memory_space<vmem>>, vector<2x32xf32>,
    %c8 = arith.constant 8 : index
    %c0_62 = arith.constant 0 : index
    %207 = vector.load %arg15[%c8, %c0_62] : memref<18x128xf32, #tpu.memory_space<vmem>>, vector<2x128xf32>
    %208 = arith.truncf %188 : vector<2x32xf32> to vector<2x32xbf16>
    %cst_63 = arith.constant dense<0.000000e+00> : vector<2x128xf32>
    %209 = tpu.matmul %208, %67, %cst_63 {dimension_numbers = #tpu.dot_dimension_numbers<[1], [0], [0], [1], [0, 0, 1, 1], [], []>} : vector<2x32xbf16>, vector<32x128xbf16>, vector<2x128xf32> -> vector<2x128xf32>
    %210 = arith.addf %207, %209 : vector<2x128xf32>
    %211 = math.tanh %210 : vector<2x128xf32>
    %212 = arith.mulf %63, %211 : vector<2x128xf32>
    %213 = arith.addf %212, %66 : vector<2x128xf32>
    %214 = vector.extract_strided_slice %213 {offsets = [0, 0], sizes = [2, 32], strides = [1, 1]} : vector<2x128xf32> to vector<2x32xf32>
    %215 = vector.extract_strided_slice %213 {offsets = [0, 32], sizes = [2, 32], strides = [1, 1]} : vector<2x128xf32> to vector<2x32xf32>
    %216 = vector.extract_strided_slice %213 {offsets = [0, 64], sizes = [2, 32], strides = [1, 1]} : vector<2x128xf32> to vector<2x32xf32>
    %217 = vector.extract_strided_slice %213 {offsets = [0, 96], sizes = [2, 32], strides = [1, 1]} : vector<2x128xf32> to vector<2x32xf32>
    %218 = arith.mulf %215, %186 : vector<2x32xf32>
    %219 = arith.mulf %214, %216 : vector<2x32xf32>
    %220 = arith.addf %218, %219 : vector<2x32xf32>
    %221 = math.tanh %220 : vector<2x32xf32>
    %222 = arith.mulf %217, %221 : vector<2x32xf32>
    %223 = tpu.concatenate %222, %205 in 1 : vector<2x32xf32>, vector<2x32xf32> -> vector<2x64xf32>
    %224 = arith.truncf %223 : vector<2x64xf32> to vector<2x64xbf16>
    %cst_64 = arith.constant dense<0.000000e+00> : vector<2x128xf32>
    %225 = tpu.matmul %224, %68, %cst_64 {dimension_numbers = #tpu.dot_dimension_numbers<[1], [0], [0], [1], [0, 0, 1, 1], [], []>} : vector<2x64xbf16>, vector<64x128xbf16>, vector<2x128xf32> -> vector<2x128xf32>
    %226 = vector.broadcast %69 : vector<1x128xf32> to vector<2x128xf32>
    %227 = arith.addf %225, %226 : vector<2x128xf32>
    %228 = math.tanh %227 : vector<2x128xf32>
    %229 = arith.mulf %63, %228 : vector<2x128xf32>
    %230 = arith.addf %229, %66 : vector<2x128xf32>
    %231 = vector.extract_strided_slice %230 {offsets = [0, 0], sizes = [2, 32], strides = [1, 1]} : vector<2x128xf32> to vector<2x32xf32>
    %232 = vector.extract_strided_slice %230 {offsets = [0, 32], sizes = [2, 32], strides = [1, 1]} : vector<2x128xf32> to vector<2x32xf32>
    %233 = vector.extract_strided_slice %230 {offsets = [0, 64], sizes = [2, 32], strides = [1, 1]} : vector<2x128xf32> to vector<2x32xf32>
    %234 = vector.extract_strided_slice %230 {offsets = [0, 96], sizes = [2, 32], strides = [1, 1]} : vector<2x128xf32> to vector<2x32xf32>
    %235 = arith.mulf %232, %203 : vector<2x32xf32>
    %236 = arith.mulf %231, %233 : vector<2x32xf32>
    %237 = arith.addf %235, %236 : vector<2x32xf32>
    %238 = math.tanh %237 : vector<2x32xf32>
    %239 = arith.mulf %234, %238 : vector<2x32xf32>
    %c8_65 = arith.constant 8 : index
    %c0_66 = arith.constant 0 : index
    %240 = vector.load %arg16[%c8_65, %c0_66] : memref<18x32xf32, #tpu.memory_space<vmem>>, vector<2x32xf32>
    tpu.vector_store %arg16[%c8_65, %c0_66], %239 {strides = array<i32>} : memref<18x32xf32, #tpu.memory_space<vmem>>, vector<2x32xf32>,
    %c10 = arith.constant 10 : index
    %c0_67 = arith.constant 0 : index
    %241 = vector.load %arg15[%c10, %c0_67] : memref<18x128xf32, #tpu.memory_space<vmem>>, vector<2x128xf32>
    %242 = arith.truncf %222 : vector<2x32xf32> to vector<2x32xbf16>
    %cst_68 = arith.constant dense<0.000000e+00> : vector<2x128xf32>
    %243 = tpu.matmul %242, %67, %cst_68 {dimension_numbers = #tpu.dot_dimension_numbers<[1], [0], [0], [1], [0, 0, 1, 1], [], []>} : vector<2x32xbf16>, vector<32x128xbf16>, vector<2x128xf32> -> vector<2x128xf32>
    %244 = arith.addf %241, %243 : vector<2x128xf32>
    %245 = math.tanh %244 : vector<2x128xf32>
    %246 = arith.mulf %63, %245 : vector<2x128xf32>
    %247 = arith.addf %246, %66 : vector<2x128xf32>
    %248 = vector.extract_strided_slice %247 {offsets = [0, 0], sizes = [2, 32], strides = [1, 1]} : vector<2x128xf32> to vector<2x32xf32>
    %249 = vector.extract_strided_slice %247 {offsets = [0, 32], sizes = [2, 32], strides = [1, 1]} : vector<2x128xf32> to vector<2x32xf32>
    %250 = vector.extract_strided_slice %247 {offsets = [0, 64], sizes = [2, 32], strides = [1, 1]} : vector<2x128xf32> to vector<2x32xf32>
    %251 = vector.extract_strided_slice %247 {offsets = [0, 96], sizes = [2, 32], strides = [1, 1]} : vector<2x128xf32> to vector<2x32xf32>
    %252 = arith.mulf %249, %220 : vector<2x32xf32>
    %253 = arith.mulf %248, %250 : vector<2x32xf32>
    %254 = arith.addf %252, %253 : vector<2x32xf32>
    %255 = math.tanh %254 : vector<2x32xf32>
    %256 = arith.mulf %251, %255 : vector<2x32xf32>
    %257 = tpu.concatenate %256, %239 in 1 : vector<2x32xf32>, vector<2x32xf32> -> vector<2x64xf32>
    %258 = arith.truncf %257 : vector<2x64xf32> to vector<2x64xbf16>
    %cst_69 = arith.constant dense<0.000000e+00> : vector<2x128xf32>
    %259 = tpu.matmul %258, %68, %cst_69 {dimension_numbers = #tpu.dot_dimension_numbers<[1], [0], [0], [1], [0, 0, 1, 1], [], []>} : vector<2x64xbf16>, vector<64x128xbf16>, vector<2x128xf32> -> vector<2x128xf32>
    %260 = vector.broadcast %69 : vector<1x128xf32> to vector<2x128xf32>
    %261 = arith.addf %259, %260 : vector<2x128xf32>
    %262 = math.tanh %261 : vector<2x128xf32>
    %263 = arith.mulf %63, %262 : vector<2x128xf32>
    %264 = arith.addf %263, %66 : vector<2x128xf32>
    %265 = vector.extract_strided_slice %264 {offsets = [0, 0], sizes = [2, 32], strides = [1, 1]} : vector<2x128xf32> to vector<2x32xf32>
    %266 = vector.extract_strided_slice %264 {offsets = [0, 32], sizes = [2, 32], strides = [1, 1]} : vector<2x128xf32> to vector<2x32xf32>
    %267 = vector.extract_strided_slice %264 {offsets = [0, 64], sizes = [2, 32], strides = [1, 1]} : vector<2x128xf32> to vector<2x32xf32>
    %268 = vector.extract_strided_slice %264 {offsets = [0, 96], sizes = [2, 32], strides = [1, 1]} : vector<2x128xf32> to vector<2x32xf32>
    %269 = arith.mulf %266, %237 : vector<2x32xf32>
    %270 = arith.mulf %265, %267 : vector<2x32xf32>
    %271 = arith.addf %269, %270 : vector<2x32xf32>
    %272 = math.tanh %271 : vector<2x32xf32>
    %273 = arith.mulf %268, %272 : vector<2x32xf32>
    %c10_70 = arith.constant 10 : index
    %c0_71 = arith.constant 0 : index
    %274 = vector.load %arg16[%c10_70, %c0_71] : memref<18x32xf32, #tpu.memory_space<vmem>>, vector<2x32xf32>
    tpu.vector_store %arg16[%c10_70, %c0_71], %273 {strides = array<i32>} : memref<18x32xf32, #tpu.memory_space<vmem>>, vector<2x32xf32>,
    %c12 = arith.constant 12 : index
    %c0_72 = arith.constant 0 : index
    %275 = vector.load %arg15[%c12, %c0_72] : memref<18x128xf32, #tpu.memory_space<vmem>>, vector<2x128xf32>
    %276 = arith.truncf %256 : vector<2x32xf32> to vector<2x32xbf16>
    %cst_73 = arith.constant dense<0.000000e+00> : vector<2x128xf32>
    %277 = tpu.matmul %276, %67, %cst_73 {dimension_numbers = #tpu.dot_dimension_numbers<[1], [0], [0], [1], [0, 0, 1, 1], [], []>} : vector<2x32xbf16>, vector<32x128xbf16>, vector<2x128xf32> -> vector<2x128xf32>
    %278 = arith.addf %275, %277 : vector<2x128xf32>
    %279 = math.tanh %278 : vector<2x128xf32>
    %280 = arith.mulf %63, %279 : vector<2x128xf32>
    %281 = arith.addf %280, %66 : vector<2x128xf32>
    %282 = vector.extract_strided_slice %281 {offsets = [0, 0], sizes = [2, 32], strides = [1, 1]} : vector<2x128xf32> to vector<2x32xf32>
    %283 = vector.extract_strided_slice %281 {offsets = [0, 32], sizes = [2, 32], strides = [1, 1]} : vector<2x128xf32> to vector<2x32xf32>
    %284 = vector.extract_strided_slice %281 {offsets = [0, 64], sizes = [2, 32], strides = [1, 1]} : vector<2x128xf32> to vector<2x32xf32>
    %285 = vector.extract_strided_slice %281 {offsets = [0, 96], sizes = [2, 32], strides = [1, 1]} : vector<2x128xf32> to vector<2x32xf32>
    %286 = arith.mulf %283, %254 : vector<2x32xf32>
    %287 = arith.mulf %282, %284 : vector<2x32xf32>
    %288 = arith.addf %286, %287 : vector<2x32xf32>
    %289 = math.tanh %288 : vector<2x32xf32>
    %290 = arith.mulf %285, %289 : vector<2x32xf32>
    %291 = tpu.concatenate %290, %273 in 1 : vector<2x32xf32>, vector<2x32xf32> -> vector<2x64xf32>
    %292 = arith.truncf %291 : vector<2x64xf32> to vector<2x64xbf16>
    %cst_74 = arith.constant dense<0.000000e+00> : vector<2x128xf32>
    %293 = tpu.matmul %292, %68, %cst_74 {dimension_numbers = #tpu.dot_dimension_numbers<[1], [0], [0], [1], [0, 0, 1, 1], [], []>} : vector<2x64xbf16>, vector<64x128xbf16>, vector<2x128xf32> -> vector<2x128xf32>
    %294 = vector.broadcast %69 : vector<1x128xf32> to vector<2x128xf32>
    %295 = arith.addf %293, %294 : vector<2x128xf32>
    %296 = math.tanh %295 : vector<2x128xf32>
    %297 = arith.mulf %63, %296 : vector<2x128xf32>
    %298 = arith.addf %297, %66 : vector<2x128xf32>
    %299 = vector.extract_strided_slice %298 {offsets = [0, 0], sizes = [2, 32], strides = [1, 1]} : vector<2x128xf32> to vector<2x32xf32>
    %300 = vector.extract_strided_slice %298 {offsets = [0, 32], sizes = [2, 32], strides = [1, 1]} : vector<2x128xf32> to vector<2x32xf32>
    %301 = vector.extract_strided_slice %298 {offsets = [0, 64], sizes = [2, 32], strides = [1, 1]} : vector<2x128xf32> to vector<2x32xf32>
    %302 = vector.extract_strided_slice %298 {offsets = [0, 96], sizes = [2, 32], strides = [1, 1]} : vector<2x128xf32> to vector<2x32xf32>
    %303 = arith.mulf %300, %271 : vector<2x32xf32>
    %304 = arith.mulf %299, %301 : vector<2x32xf32>
    %305 = arith.addf %303, %304 : vector<2x32xf32>
    %306 = math.tanh %305 : vector<2x32xf32>
    %307 = arith.mulf %302, %306 : vector<2x32xf32>
    %c12_75 = arith.constant 12 : index
    %c0_76 = arith.constant 0 : index
    %308 = vector.load %arg16[%c12_75, %c0_76] : memref<18x32xf32, #tpu.memory_space<vmem>>, vector<2x32xf32>
    tpu.vector_store %arg16[%c12_75, %c0_76], %307 {strides = array<i32>} : memref<18x32xf32, #tpu.memory_space<vmem>>, vector<2x32xf32>,
    %c14 = arith.constant 14 : index
    %c0_77 = arith.constant 0 : index
    %309 = vector.load %arg15[%c14, %c0_77] : memref<18x128xf32, #tpu.memory_space<vmem>>, vector<2x128xf32>
    %310 = arith.truncf %290 : vector<2x32xf32> to vector<2x32xbf16>
    %cst_78 = arith.constant dense<0.000000e+00> : vector<2x128xf32>
    %311 = tpu.matmul %310, %67, %cst_78 {dimension_numbers = #tpu.dot_dimension_numbers<[1], [0], [0], [1], [0, 0, 1, 1], [], []>} : vector<2x32xbf16>, vector<32x128xbf16>, vector<2x128xf32> -> vector<2x128xf32>
    %312 = arith.addf %309, %311 : vector<2x128xf32>
    %313 = math.tanh %312 : vector<2x128xf32>
    %314 = arith.mulf %63, %313 : vector<2x128xf32>
    %315 = arith.addf %314, %66 : vector<2x128xf32>
    %316 = vector.extract_strided_slice %315 {offsets = [0, 0], sizes = [2, 32], strides = [1, 1]} : vector<2x128xf32> to vector<2x32xf32>
    %317 = vector.extract_strided_slice %315 {offsets = [0, 32], sizes = [2, 32], strides = [1, 1]} : vector<2x128xf32> to vector<2x32xf32>
    %318 = vector.extract_strided_slice %315 {offsets = [0, 64], sizes = [2, 32], strides = [1, 1]} : vector<2x128xf32> to vector<2x32xf32>
    %319 = vector.extract_strided_slice %315 {offsets = [0, 96], sizes = [2, 32], strides = [1, 1]} : vector<2x128xf32> to vector<2x32xf32>
    %320 = arith.mulf %317, %288 : vector<2x32xf32>
    %321 = arith.mulf %316, %318 : vector<2x32xf32>
    %322 = arith.addf %320, %321 : vector<2x32xf32>
    %323 = math.tanh %322 : vector<2x32xf32>
    %324 = arith.mulf %319, %323 : vector<2x32xf32>
    %325 = tpu.concatenate %324, %307 in 1 : vector<2x32xf32>, vector<2x32xf32> -> vector<2x64xf32>
    %326 = arith.truncf %325 : vector<2x64xf32> to vector<2x64xbf16>
    %cst_79 = arith.constant dense<0.000000e+00> : vector<2x128xf32>
    %327 = tpu.matmul %326, %68, %cst_79 {dimension_numbers = #tpu.dot_dimension_numbers<[1], [0], [0], [1], [0, 0, 1, 1], [], []>} : vector<2x64xbf16>, vector<64x128xbf16>, vector<2x128xf32> -> vector<2x128xf32>
    %328 = vector.broadcast %69 : vector<1x128xf32> to vector<2x128xf32>
    %329 = arith.addf %327, %328 : vector<2x128xf32>
    %330 = math.tanh %329 : vector<2x128xf32>
    %331 = arith.mulf %63, %330 : vector<2x128xf32>
    %332 = arith.addf %331, %66 : vector<2x128xf32>
    %333 = vector.extract_strided_slice %332 {offsets = [0, 0], sizes = [2, 32], strides = [1, 1]} : vector<2x128xf32> to vector<2x32xf32>
    %334 = vector.extract_strided_slice %332 {offsets = [0, 32], sizes = [2, 32], strides = [1, 1]} : vector<2x128xf32> to vector<2x32xf32>
    %335 = vector.extract_strided_slice %332 {offsets = [0, 64], sizes = [2, 32], strides = [1, 1]} : vector<2x128xf32> to vector<2x32xf32>
    %336 = vector.extract_strided_slice %332 {offsets = [0, 96], sizes = [2, 32], strides = [1, 1]} : vector<2x128xf32> to vector<2x32xf32>
    %337 = arith.mulf %334, %305 : vector<2x32xf32>
    %338 = arith.mulf %333, %335 : vector<2x32xf32>
    %339 = arith.addf %337, %338 : vector<2x32xf32>
    %340 = math.tanh %339 : vector<2x32xf32>
    %341 = arith.mulf %336, %340 : vector<2x32xf32>
    %c14_80 = arith.constant 14 : index
    %c0_81 = arith.constant 0 : index
    %342 = vector.load %arg16[%c14_80, %c0_81] : memref<18x32xf32, #tpu.memory_space<vmem>>, vector<2x32xf32>
    tpu.vector_store %arg16[%c14_80, %c0_81], %341 {strides = array<i32>} : memref<18x32xf32, #tpu.memory_space<vmem>>, vector<2x32xf32>,
    %c16 = arith.constant 16 : index
    %c0_82 = arith.constant 0 : index
    %343 = vector.load %arg15[%c16, %c0_82] : memref<18x128xf32, #tpu.memory_space<vmem>>, vector<2x128xf32>
    %344 = arith.truncf %324 : vector<2x32xf32> to vector<2x32xbf16>
    %cst_83 = arith.constant dense<0.000000e+00> : vector<2x128xf32>
    %345 = tpu.matmul %344, %67, %cst_83 {dimension_numbers = #tpu.dot_dimension_numbers<[1], [0], [0], [1], [0, 0, 1, 1], [], []>} : vector<2x32xbf16>, vector<32x128xbf16>, vector<2x128xf32> -> vector<2x128xf32>
    %346 = arith.addf %343, %345 : vector<2x128xf32>
    %347 = math.tanh %346 : vector<2x128xf32>
    %348 = arith.mulf %63, %347 : vector<2x128xf32>
    %349 = arith.addf %348, %66 : vector<2x128xf32>
    %350 = vector.extract_strided_slice %349 {offsets = [0, 0], sizes = [2, 32], strides = [1, 1]} : vector<2x128xf32> to vector<2x32xf32>
    %351 = vector.extract_strided_slice %349 {offsets = [0, 32], sizes = [2, 32], strides = [1, 1]} : vector<2x128xf32> to vector<2x32xf32>
    %352 = vector.extract_strided_slice %349 {offsets = [0, 64], sizes = [2, 32], strides = [1, 1]} : vector<2x128xf32> to vector<2x32xf32>
    %353 = vector.extract_strided_slice %349 {offsets = [0, 96], sizes = [2, 32], strides = [1, 1]} : vector<2x128xf32> to vector<2x32xf32>
    %354 = arith.mulf %351, %322 : vector<2x32xf32>
    %355 = arith.mulf %350, %352 : vector<2x32xf32>
    %356 = arith.addf %354, %355 : vector<2x32xf32>
    %357 = math.tanh %356 : vector<2x32xf32>
    %358 = arith.mulf %353, %357 : vector<2x32xf32>
    %359 = tpu.concatenate %358, %341 in 1 : vector<2x32xf32>, vector<2x32xf32> -> vector<2x64xf32>
    %360 = arith.truncf %359 : vector<2x64xf32> to vector<2x64xbf16>
    %cst_84 = arith.constant dense<0.000000e+00> : vector<2x128xf32>
    %361 = tpu.matmul %360, %68, %cst_84 {dimension_numbers = #tpu.dot_dimension_numbers<[1], [0], [0], [1], [0, 0, 1, 1], [], []>} : vector<2x64xbf16>, vector<64x128xbf16>, vector<2x128xf32> -> vector<2x128xf32>
    %362 = vector.broadcast %69 : vector<1x128xf32> to vector<2x128xf32>
    %363 = arith.addf %361, %362 : vector<2x128xf32>
    %364 = math.tanh %363 : vector<2x128xf32>
    %365 = arith.mulf %63, %364 : vector<2x128xf32>
    %366 = arith.addf %365, %66 : vector<2x128xf32>
    %367 = vector.extract_strided_slice %366 {offsets = [0, 0], sizes = [2, 32], strides = [1, 1]} : vector<2x128xf32> to vector<2x32xf32>
    %368 = vector.extract_strided_slice %366 {offsets = [0, 32], sizes = [2, 32], strides = [1, 1]} : vector<2x128xf32> to vector<2x32xf32>
    %369 = vector.extract_strided_slice %366 {offsets = [0, 64], sizes = [2, 32], strides = [1, 1]} : vector<2x128xf32> to vector<2x32xf32>
    %370 = vector.extract_strided_slice %366 {offsets = [0, 96], sizes = [2, 32], strides = [1, 1]} : vector<2x128xf32> to vector<2x32xf32>
    %371 = arith.mulf %368, %339 : vector<2x32xf32>
    %372 = arith.mulf %367, %369 : vector<2x32xf32>
    %373 = arith.addf %371, %372 : vector<2x32xf32>
    %374 = math.tanh %373 : vector<2x32xf32>
    %375 = arith.mulf %370, %374 : vector<2x32xf32>
    %c16_85 = arith.constant 16 : index
    %c0_86 = arith.constant 0 : index
    %376 = vector.load %arg16[%c16_85, %c0_86] : memref<18x32xf32, #tpu.memory_space<vmem>>, vector<2x32xf32>
    tpu.vector_store %arg16[%c16_85, %c0_86], %375 {strides = array<i32>} : memref<18x32xf32, #tpu.memory_space<vmem>>, vector<2x32xf32>,
    %c0_87 = arith.constant 0 : index
    %c0_88 = arith.constant 0 : index
    %377 = vector.load %arg16[%c0_87, %c0_88] : memref<18x32xf32, #tpu.memory_space<vmem>>, vector<18x32xf32>
    %378 = arith.truncf %377 : vector<18x32xf32> to vector<18x32xbf16>
    %c0_89 = arith.constant 0 : index
    %c0_90 = arith.constant 0 : index
    %379 = vector.load %arg12[%c0_89, %c0_90] : memref<32x128xbf16, #tpu.memory_space<vmem>>, vector<32x128xbf16>
    %cst_91 = arith.constant dense<0.000000e+00> : vector<18x128xf32>
    %380 = tpu.matmul %378, %379, %cst_91 {dimension_numbers = #tpu.dot_dimension_numbers<[1], [0], [0], [1], [0, 0, 1, 1], [], []>} : vector<18x32xbf16>, vector<32x128xbf16>, vector<18x128xf32> -> vector<18x128xf32>
    %c0_92 = arith.constant 0 : index
    %c0_93 = arith.constant 0 : index
    %381 = vector.load %arg13[%c0_92, %c0_93] : memref<1x128xf32, #tpu.memory_space<vmem>>, vector<1x128xf32>
    %382 = vector.broadcast %381 : vector<1x128xf32> to vector<18x128xf32>
    %383 = arith.addf %380, %382 : vector<18x128xf32>
    %c0_94 = arith.constant 0 : index
    %c0_95 = arith.constant 0 : index
    %384 = vector.load %arg14[%c0_94, %c0_95] : memref<18x128xf32, #tpu.memory_space<vmem>>, vector<18x128xf32>
    tpu.vector_store %arg14[%c0_94, %c0_95], %383 {strides = array<i32>} : memref<18x128xf32, #tpu.memory_space<vmem>>, vector<18x128xf32>,
    return
  }
}

</mosaic_0001>

<llo_original>
// kernel: cnn_to_rnn_forward.1
$region0: #{cnn_to_rnn_forward.1}
  #allocation0 [shape = 'u32[]', space=smem, size = 0x4, offset = 0x4, fixed_abs, tag = 'smem constant byte address 0x4 - core index']
  #allocation1 [shape = 'u32[72,128]{1,0:T(1,128)}', space=vmem, size = 0x9000, scoped, tag = 'internal scratch']
  #allocation2 [shape = 'f32[18,128]{1,0:T(8,128)}', space=vmem, size = 0x3000, scoped, tag = 'scratch operand']
  #allocation3 [shape = 'f32[18,32]{1,0:T(8,128)}', space=vmem, size = 0x3000, scoped, tag = 'scratch operand']
  %s0 = inlined_call_operand.vmem [shape: s32[16,1], index: 0, kind: input, shape index: {}]
  %s1 = inlined_call_operand.vmem [shape: bf16[392,128], index: 1, kind: input, shape index: {}]
  %s2 = inlined_call_operand.vmem [shape: bf16[128,32], index: 2, kind: input, shape index: {}]
  %s3 = inlined_call_operand.vmem [shape: f32[1,32], index: 3, kind: input, shape index: {}]
  %s4 = inlined_call_operand.vmem [shape: bf16[32,16], index: 4, kind: input, shape index: {}]
  %s5 = inlined_call_operand.vmem [shape: f32[1,16], index: 5, kind: input, shape index: {}]
  %s6 = inlined_call_operand.vmem [shape: bf16[64,16], index: 6, kind: input, shape index: {}]
  %s7 = inlined_call_operand.vmem [shape: bf16[16,128], index: 7, kind: input, shape index: {}]
  %s8 = inlined_call_operand.vmem [shape: bf16[32,128], index: 8, kind: input, shape index: {}]
  %s9 = inlined_call_operand.vmem [shape: f32[1,128], index: 9, kind: input, shape index: {}]
  %s10 = inlined_call_operand.vmem [shape: bf16[64,128], index: 10, kind: input, shape index: {}]
  %s11 = inlined_call_operand.vmem [shape: f32[1,128], index: 11, kind: input, shape index: {}]
  %s12 = inlined_call_operand.vmem [shape: bf16[32,128], index: 12, kind: input, shape index: {}]
  %s13 = inlined_call_operand.vmem [shape: f32[1,128], index: 13, kind: input, shape index: {}]
  %s14 = inlined_call_operand.vmem [shape: f32[18,128], index: 14, kind: output, shape index: {}]
  %s15 = sld [smem:[#allocation0]]
  $region66: #{cnn_to_rnn_forward.1} parent=0
    _
  %s17 = ssub.s32 1, %s15
  %s18 = scalar_select 0, %s17, %s15
  // Predicated region
  $region2: #{cnn_to_rnn_forward.1} parent=0 // pred_check
    _
  $region3: #{cnn_to_rnn_forward.1} parent=0 // pred_check_branch
    %20 = sbr.rel (0) target = $region5
  $region4: #{cnn_to_rnn_forward.1} parent=0 // pred_region
    _
  $region5: #{cnn_to_rnn_forward.1} parent=0 // pred_fallthru
    _
  // Predicated region
  $region6: #{cnn_to_rnn_forward.1} parent=0 // pred_check
    _
  $region7: #{cnn_to_rnn_forward.1} parent=0 // pred_check_branch
    %22 = sbr.rel (0) target = $region9
  $region8: #{cnn_to_rnn_forward.1} parent=0 // pred_region
    _
  $region9: #{cnn_to_rnn_forward.1} parent=0 // pred_fallthru
    _
  // Predicated region
  $region10: #{cnn_to_rnn_forward.1} parent=0 // pred_check
    _
  $region11: #{cnn_to_rnn_forward.1} parent=0 // pred_check_branch
    %24 = sbr.rel (0) target = $region13
  $region12: #{cnn_to_rnn_forward.1} parent=0 // pred_region
    _
  $region13: #{cnn_to_rnn_forward.1} parent=0 // pred_fallthru
    _
  // Predicated region
  $region14: #{cnn_to_rnn_forward.1} parent=0 // pred_check
    _
  $region15: #{cnn_to_rnn_forward.1} parent=0 // pred_check_branch
    %26 = sbr.rel (0) target = $region17
  $region16: #{cnn_to_rnn_forward.1} parent=0 // pred_region
    _
  $region17: #{cnn_to_rnn_forward.1} parent=0 // pred_fallthru
    _
  // Predicated region
  $region18: #{cnn_to_rnn_forward.1} parent=0 // pred_check
    _
  $region19: #{cnn_to_rnn_forward.1} parent=0 // pred_check_branch
    %28 = sbr.rel (0) target = $region21
  $region20: #{cnn_to_rnn_forward.1} parent=0 // pred_region
    _
  $region21: #{cnn_to_rnn_forward.1} parent=0 // pred_fallthru
    _
  // Predicated region
  $region22: #{cnn_to_rnn_forward.1} parent=0 // pred_check
    _
  $region23: #{cnn_to_rnn_forward.1} parent=0 // pred_check_branch
    %30 = sbr.rel (0) target = $region25
  $region24: #{cnn_to_rnn_forward.1} parent=0 // pred_region
    _
  $region25: #{cnn_to_rnn_forward.1} parent=0 // pred_fallthru
    _
  // Predicated region
  $region26: #{cnn_to_rnn_forward.1} parent=0 // pred_check
    _
  $region27: #{cnn_to_rnn_forward.1} parent=0 // pred_check_branch
    %32 = sbr.rel (0) target = $region29
  $region28: #{cnn_to_rnn_forward.1} parent=0 // pred_region
    _
  $region29: #{cnn_to_rnn_forward.1} parent=0 // pred_fallthru
    _
  // Predicated region
  $region30: #{cnn_to_rnn_forward.1} parent=0 // pred_check
    _
  $region31: #{cnn_to_rnn_forward.1} parent=0 // pred_check_branch
    %34 = sbr.rel (0) target = $region33
  $region32: #{cnn_to_rnn_forward.1} parent=0 // pred_region
    _
  $region33: #{cnn_to_rnn_forward.1} parent=0 // pred_fallthru
    _
  // Predicated region
  $region34: #{cnn_to_rnn_forward.1} parent=0 // pred_check
    _
  $region35: #{cnn_to_rnn_forward.1} parent=0 // pred_check_branch
    %36 = sbr.rel (0) target = $region37
  $region36: #{cnn_to_rnn_forward.1} parent=0 // pred_region
    _
  $region37: #{cnn_to_rnn_forward.1} parent=0 // pred_fallthru
    _
  // Predicated region
  $region38: #{cnn_to_rnn_forward.1} parent=0 // pred_check
    _
  $region39: #{cnn_to_rnn_forward.1} parent=0 // pred_check_branch
    %38 = sbr.rel (0) target = $region41
  $region40: #{cnn_to_rnn_forward.1} parent=0 // pred_region
    _
  $region41: #{cnn_to_rnn_forward.1} parent=0 // pred_fallthru
    _
  // Predicated region
  $region42: #{cnn_to_rnn_forward.1} parent=0 // pred_check
    _
  $region43: #{cnn_to_rnn_forward.1} parent=0 // pred_check_branch
    %40 = sbr.rel (0) target = $region45
  $region44: #{cnn_to_rnn_forward.1} parent=0 // pred_region
    _
  $region45: #{cnn_to_rnn_forward.1} parent=0 // pred_fallthru
    _
  // Predicated region
  $region46: #{cnn_to_rnn_forward.1} parent=0 // pred_check
    _
  $region47: #{cnn_to_rnn_forward.1} parent=0 // pred_check_branch
    %42 = sbr.rel (0) target = $region49
  $region48: #{cnn_to_rnn_forward.1} parent=0 // pred_region
    _
  $region49: #{cnn_to_rnn_forward.1} parent=0 // pred_fallthru
    _
  // Predicated region
  $region50: #{cnn_to_rnn_forward.1} parent=0 // pred_check
    _
  $region51: #{cnn_to_rnn_forward.1} parent=0 // pred_check_branch
    %44 = sbr.rel (0) target = $region53
  $region52: #{cnn_to_rnn_forward.1} parent=0 // pred_region
    _
  $region53: #{cnn_to_rnn_forward.1} parent=0 // pred_fallthru
    _
  // Predicated region
  $region54: #{cnn_to_rnn_forward.1} parent=0 // pred_check
    _
  $region55: #{cnn_to_rnn_forward.1} parent=0 // pred_check_branch
    %46 = sbr.rel (0) target = $region57
  $region56: #{cnn_to_rnn_forward.1} parent=0 // pred_region
    _
  $region57: #{cnn_to_rnn_forward.1} parent=0 // pred_fallthru
    _
  %v48 = vld [vmem:[%s1] sm:$0xf]
  %v49 = vld [vmem:[%s1 + $0x4] sm:$0xf]
  %v50 = vld [vmem:[%s1 + $0x8] sm:$0xf]
  %v51 = vld [vmem:[%s1 + $0xc] sm:$0xf]
  %v52 = vld [vmem:[%s1 + $0x10] sm:$0xf]
  %v53 = vld [vmem:[%s1 + $0x14] sm:$0xf]
  %v54 = vld [vmem:[%s1 + $0x18] sm:$0xf]
  %v55 = vld [vmem:[%s1 + $0x1c] sm:$0xf]
  %v56 = vld [vmem:[%s1 + $0x20] sm:$0xf]
  %v57 = vld [vmem:[%s1 + $0x24] sm:$0xf]
  %v58 = vld [vmem:[%s1 + $0x28] sm:$0xf]
  %v59 = vld [vmem:[%s1 + $0x2c] sm:$0xf]
  %v60 = vld [vmem:[%s1 + $0x30] sm:$0xf]
  %v61 = vld [vmem:[%s1 + $0x34] sm:$0xf]
  %v62 = vld [vmem:[%s1 + $0x38] sm:$0xf]
  %v63 = vld [vmem:[%s1 + $0x3c] sm:$0xf]
  %v64 = vld [vmem:[%s1 + $0x40] sm:$0xf]
  %v65 = vld [vmem:[%s1 + $0x44] sm:$0xf]
  %v66 = vld [vmem:[%s1 + $0x48] sm:$0xf]
  %v67 = vld [vmem:[%s1 + $0x4c] sm:$0xf]
  %v68 = vld [vmem:[%s1 + $0x50] sm:$0xf]
  %v69 = vld [vmem:[%s1 + $0x54] sm:$0xf]
  %v70 = vld [vmem:[%s1 + $0x58] sm:$0xf]
  %v71 = vld [vmem:[%s1 + $0x5c] sm:$0xf]
  %v72 = vld [vmem:[%s1 + $0x60] sm:$0xf]
  %v73 = vld [vmem:[%s1 + $0x64] sm:$0xf]
  %v74 = vld [vmem:[%s1 + $0x68] sm:$0xf]
  %v75 = vld [vmem:[%s1 + $0x6c] sm:$0xf]
  %v76 = vld [vmem:[%s1 + $0x70] sm:$0xf]
  %v77 = vld [vmem:[%s1 + $0x74] sm:$0xf]
  %v78 = vld [vmem:[%s1 + $0x78] sm:$0xf]
  %v79 = vld [vmem:[%s1 + $0x7c] sm:$0xf]
  %v80 = vld [vmem:[%s1 + $0x80] sm:$0xf]
  %v81 = vld [vmem:[%s1 + $0x84] sm:$0xf]
  %v82 = vld [vmem:[%s1 + $0x88] sm:$0xf]
  %v83 = vld [vmem:[%s1 + $0x8c] sm:$0xf]
  %v84 = vld [vmem:[%s1 + $0x90] sm:$0xf]
  %v85 = vld [vmem:[%s1 + $0x94] sm:$0xf]
  %v86 = vld [vmem:[%s1 + $0x98] sm:$0xf]
  %v87 = vld [vmem:[%s1 + $0x9c] sm:$0xf]
  %v88 = vld [vmem:[%s1 + $0xa0] sm:$0xf]
  %v89 = vld [vmem:[%s1 + $0xa4] sm:$0xf]
  %v90 = vld [vmem:[%s1 + $0xa8] sm:$0xf]
  %v91 = vld [vmem:[%s1 + $0xac] sm:$0xf]
  %v92 = vld [vmem:[%s1 + $0xb0] sm:$0xf]
  %v93 = vld [vmem:[%s1 + $0xb4] sm:$0xf]
  %v94 = vld [vmem:[%s1 + $0xb8] sm:$0xf]
  %v95 = vld [vmem:[%s1 + $0xbc] sm:$0xf]
  %v96 = vld [vmem:[%s1 + $0xc0] sm:$0xf]
  %v97 = vld [vmem:[%s2] sm:$0xf]
  %v98 = vld [vmem:[%s2 + $0x4] sm:$0xf]
  %v99 = vld [vmem:[%s2 + $0x8] sm:$0xf]
  %v100 = vld [vmem:[%s2 + $0xc] sm:$0xf]
  %v101 = vld [vmem:[%s2 + $0x10] sm:$0xf]
  %v102 = vld [vmem:[%s2 + $0x14] sm:$0xf]
  %v103 = vld [vmem:[%s2 + $0x18] sm:$0xf]
  %v104 = vld [vmem:[%s2 + $0x1c] sm:$0xf]
  %v105 = vld [vmem:[%s2 + $0x20] sm:$0xf]
  %v106 = vld [vmem:[%s2 + $0x24] sm:$0xf]
  %v107 = vld [vmem:[%s2 + $0x28] sm:$0xf]
  %v108 = vld [vmem:[%s2 + $0x2c] sm:$0xf]
  %v109 = vld [vmem:[%s2 + $0x30] sm:$0xf]
  %v110 = vld [vmem:[%s2 + $0x34] sm:$0xf]
  %v111 = vld [vmem:[%s2 + $0x38] sm:$0xf]
  %v112 = vld [vmem:[%s2 + $0x3c] sm:$0xf]
  %v113 = vld [vmem:[%s3] sm:$0x1]
  %v115 = vperm.slane %v113, 0
  %v166 = vunpack.c.l.b16 %v48
  %v167 = vunpack.c.l.b16 %v49
  %v168 = vunpack.c.l.b16 %v50
  %v169 = vunpack.c.l.b16 %v51
  %v170 = vunpack.c.l.b16 %v52
  %v171 = vunpack.c.l.b16 %v53
  %v172 = vunpack.c.l.b16 %v54
  %v173 = vunpack.c.l.b16 %v55
  %v174 = vunpack.c.l.b16 %v56
  %v175 = vunpack.c.l.b16 %v57
  %v176 = vunpack.c.l.b16 %v58
  %v177 = vunpack.c.l.b16 %v59
  %v178 = vunpack.c.l.b16 %v60
  %v179 = vunpack.c.l.b16 %v61
  %v180 = vunpack.c.l.b16 %v62
  %v181 = vunpack.c.l.b16 %v63
  %v182 = vunpack.c.l.b16 %v64
  %v183 = vunpack.c.l.b16 %v65
  %v184 = vunpack.c.l.b16 %v66
  %v185 = vunpack.c.l.b16 %v67
  %v186 = vunpack.c.l.b16 %v68
  %v187 = vunpack.c.l.b16 %v69
  %v188 = vunpack.c.l.b16 %v70
  %v189 = vunpack.c.l.b16 %v71
  %v190 = vunpack.c.l.b16 %v72
  %v191 = vunpack.c.l.b16 %v73
  %v192 = vunpack.c.l.b16 %v74
  %v193 = vunpack.c.l.b16 %v75
  %v194 = vunpack.c.l.b16 %v76
  %v195 = vunpack.c.l.b16 %v77
  %v196 = vunpack.c.l.b16 %v78
  %v197 = vunpack.c.l.b16 %v79
  %v198 = vunpack.c.l.b16 %v80
  %v199 = vunpack.c.l.b16 %v81
  %v200 = vunpack.c.l.b16 %v82
  %v201 = vunpack.c.l.b16 %v83
  %v202 = vunpack.c.l.b16 %v84
  %v203 = vunpack.c.l.b16 %v85
  %v204 = vunpack.c.l.b16 %v86
  %v205 = vunpack.c.l.b16 %v87
  %v206 = vunpack.c.l.b16 %v88
  %v207 = vunpack.c.l.b16 %v89
  %v208 = vunpack.c.l.b16 %v90
  %v209 = vunpack.c.l.b16 %v91
  %v210 = vunpack.c.l.b16 %v92
  %v211 = vunpack.c.l.b16 %v93
  %v212 = vunpack.c.l.b16 %v94
  %v213 = vunpack.c.l.b16 %v95
  %v214 = vunpack.c.l.b16 %v96
  %v215 = vpack.c.b16 %v167, %v166
  %v216 = vpack.c.b16 %v169, %v168
  %v217 = vpack.c.b16 %v171, %v170
  %v218 = vpack.c.b16 %v173, %v172
  %v219 = vpack.c.b16 %v175, %v174
  %v220 = vpack.c.b16 %v177, %v176
  %v221 = vpack.c.b16 %v179, %v178
  %v222 = vpack.c.b16 %v181, %v180
  %v223 = vpack.c.b16 %v183, %v182
  %v224 = vpack.c.b16 %v185, %v184
  %v225 = vpack.c.b16 %v187, %v186
  %v226 = vpack.c.b16 %v189, %v188
  %v227 = vpack.c.b16 %v191, %v190
  %v228 = vpack.c.b16 %v193, %v192
  %v229 = vpack.c.b16 %v195, %v194
  %v230 = vpack.c.b16 %v197, %v196
  %v231 = vpack.c.b16 %v199, %v198
  %v232 = vpack.c.b16 %v201, %v200
  %v233 = vpack.c.b16 %v203, %v202
  %v234 = vpack.c.b16 %v205, %v204
  %v235 = vpack.c.b16 %v207, %v206
  %v236 = vpack.c.b16 %v209, %v208
  %v237 = vpack.c.b16 %v211, %v210
  %v238 = vpack.c.b16 %v213, %v212
  %v239 = vpack.c.b16 %v214, %v214
  %v281 = vunpack.c.l.b16 %v97
  %v282 = vunpack.c.l.b16 %v98
  %v283 = vunpack.c.l.b16 %v99
  %v284 = vunpack.c.l.b16 %v100
  %v285 = vunpack.c.l.b16 %v101
  %v286 = vunpack.c.l.b16 %v102
  %v287 = vunpack.c.l.b16 %v103
  %v288 = vunpack.c.l.b16 %v104
  %v289 = vunpack.c.l.b16 %v105
  %v290 = vunpack.c.l.b16 %v106
  %v291 = vunpack.c.l.b16 %v107
  %v292 = vunpack.c.l.b16 %v108
  %v293 = vunpack.c.l.b16 %v109
  %v294 = vunpack.c.l.b16 %v110
  %v295 = vunpack.c.l.b16 %v111
  %v296 = vunpack.c.l.b16 %v112
  %v297 = vpack.c.b16 %v282, %v281
  %v298 = vpack.c.b16 %v284, %v283
  %v299 = vpack.c.b16 %v286, %v285
  %v300 = vpack.c.b16 %v288, %v287
  %v301 = vpack.c.b16 %v290, %v289
  %v302 = vpack.c.b16 %v292, %v291
  %v303 = vpack.c.b16 %v294, %v293
  %v304 = vpack.c.b16 %v296, %v295
  %313 = vmatpush.bf16.msra.mxu0 %v304
  %314 = vmatpush.bf16.msra.mxu0 %v303
  %315 = vmatpush.bf16.msra.mxu0 %v302
  %316 = vmatpush.bf16.msra.mxu0 %v301
  %317 = vmatpush.bf16.msra.mxu0 %v300
  %318 = vmatpush.bf16.msra.mxu0 %v299
  %319 = vmatpush.bf16.msra.mxu0 %v298
  %320 = vmatpush.bf16.msra.mxu0 %v297
  %321 = vmatmul.bf16.gmra.mxu0 %v215
  %v322 = vpop.f32.mrf.mxu0
  %v323 = vadd.f32 %v115, %v322
  %v324 = vpop.f32.mrf.mxu0
  %v325 = vadd.f32 %v115, %v324
  %326 = vmatmul.bf16.gmra.mxu0 %v216
  %v327 = vpop.f32.mrf.mxu0
  %v328 = vadd.f32 %v115, %v327
  %v329 = vpop.f32.mrf.mxu0
  %v330 = vadd.f32 %v115, %v329
  %331 = vmatmul.bf16.gmra.mxu0 %v217
  %v332 = vpop.f32.mrf.mxu0
  %v333 = vadd.f32 %v115, %v332
  %v334 = vpop.f32.mrf.mxu0
  %v335 = vadd.f32 %v115, %v334
  %336 = vmatmul.bf16.gmra.mxu0 %v218
  %v337 = vpop.f32.mrf.mxu0
  %v338 = vadd.f32 %v115, %v337
  %v339 = vpop.f32.mrf.mxu0
  %v340 = vadd.f32 %v115, %v339
  %341 = vmatmul.bf16.gmra.mxu0 %v219
  %v342 = vpop.f32.mrf.mxu0
  %v343 = vadd.f32 %v115, %v342
  %v344 = vpop.f32.mrf.mxu0
  %v345 = vadd.f32 %v115, %v344
  %346 = vmatmul.bf16.gmra.mxu0 %v220
  %v347 = vpop.f32.mrf.mxu0
  %v348 = vadd.f32 %v115, %v347
  %v349 = vpop.f32.mrf.mxu0
  %v350 = vadd.f32 %v115, %v349
  %351 = vmatmul.bf16.gmra.mxu0 %v221
  %v352 = vpop.f32.mrf.mxu0
  %v353 = vadd.f32 %v115, %v352
  %v354 = vpop.f32.mrf.mxu0
  %v355 = vadd.f32 %v115, %v354
  %356 = vmatmul.bf16.gmra.mxu0 %v222
  %v357 = vpop.f32.mrf.mxu0
  %v358 = vadd.f32 %v115, %v357
  %v359 = vpop.f32.mrf.mxu0
  %v360 = vadd.f32 %v115, %v359
  %361 = vmatmul.bf16.gmra.mxu0 %v223
  %v362 = vpop.f32.mrf.mxu0
  %v363 = vadd.f32 %v115, %v362
  %v364 = vpop.f32.mrf.mxu0
  %v365 = vadd.f32 %v115, %v364
  %366 = vmatmul.bf16.gmra.mxu0 %v224
  %v367 = vpop.f32.mrf.mxu0
  %v368 = vadd.f32 %v115, %v367
  %v369 = vpop.f32.mrf.mxu0
  %v370 = vadd.f32 %v115, %v369
  %371 = vmatmul.bf16.gmra.mxu0 %v225
  %v372 = vpop.f32.mrf.mxu0
  %v373 = vadd.f32 %v115, %v372
  %v374 = vpop.f32.mrf.mxu0
  %v375 = vadd.f32 %v115, %v374
  %376 = vmatmul.bf16.gmra.mxu0 %v226
  %v377 = vpop.f32.mrf.mxu0
  %v378 = vadd.f32 %v115, %v377
  %v379 = vpop.f32.mrf.mxu0
  %v380 = vadd.f32 %v115, %v379
  %381 = vmatmul.bf16.gmra.mxu0 %v227
  %v382 = vpop.f32.mrf.mxu0
  %v383 = vadd.f32 %v115, %v382
  %v384 = vpop.f32.mrf.mxu0
  %v385 = vadd.f32 %v115, %v384
  %386 = vmatmul.bf16.gmra.mxu0 %v228
  %v387 = vpop.f32.mrf.mxu0
  %v388 = vadd.f32 %v115, %v387
  %v389 = vpop.f32.mrf.mxu0
  %v390 = vadd.f32 %v115, %v389
  %391 = vmatmul.bf16.gmra.mxu0 %v229
  %v392 = vpop.f32.mrf.mxu0
  %v393 = vadd.f32 %v115, %v392
  %v394 = vpop.f32.mrf.mxu0
  %v395 = vadd.f32 %v115, %v394
  %396 = vmatmul.bf16.gmra.mxu0 %v230
  %v397 = vpop.f32.mrf.mxu0
  %v398 = vadd.f32 %v115, %v397
  %v399 = vpop.f32.mrf.mxu0
  %v400 = vadd.f32 %v115, %v399
  %401 = vmatmul.bf16.gmra.mxu0 %v231
  %v402 = vpop.f32.mrf.mxu0
  %v403 = vadd.f32 %v115, %v402
  %v404 = vpop.f32.mrf.mxu0
  %v405 = vadd.f32 %v115, %v404
  %406 = vmatmul.bf16.gmra.mxu0 %v232
  %v407 = vpop.f32.mrf.mxu0
  %v408 = vadd.f32 %v115, %v407
  %v409 = vpop.f32.mrf.mxu0
  %v410 = vadd.f32 %v115, %v409
  %411 = vmatmul.bf16.gmra.mxu0 %v233
  %v412 = vpop.f32.mrf.mxu0
  %v413 = vadd.f32 %v115, %v412
  %v414 = vpop.f32.mrf.mxu0
  %v415 = vadd.f32 %v115, %v414
  %416 = vmatmul.bf16.gmra.mxu0 %v234
  %v417 = vpop.f32.mrf.mxu0
  %v418 = vadd.f32 %v115, %v417
  %v419 = vpop.f32.mrf.mxu0
  %v420 = vadd.f32 %v115, %v419
  %421 = vmatmul.bf16.gmra.mxu0 %v235
  %v422 = vpop.f32.mrf.mxu0
  %v423 = vadd.f32 %v115, %v422
  %v424 = vpop.f32.mrf.mxu0
  %v425 = vadd.f32 %v115, %v424
  %426 = vmatmul.bf16.gmra.mxu0 %v236
  %v427 = vpop.f32.mrf.mxu0
  %v428 = vadd.f32 %v115, %v427
  %v429 = vpop.f32.mrf.mxu0
  %v430 = vadd.f32 %v115, %v429
  %431 = vmatmul.bf16.gmra.mxu0 %v237
  %v432 = vpop.f32.mrf.mxu0
  %v433 = vadd.f32 %v115, %v432
  %v434 = vpop.f32.mrf.mxu0
  %v435 = vadd.f32 %v115, %v434
  %436 = vmatmul.bf16.gmra.mxu0 %v238
  %v437 = vpop.f32.mrf.mxu0
  %v438 = vadd.f32 %v115, %v437
  %v439 = vpop.f32.mrf.mxu0
  %v440 = vadd.f32 %v115, %v439
  %441 = vmatmul.bf16.gmra.mxu0 %v239
  %v442 = vpop.f32.mrf.mxu0
  %v443 = vadd.f32 %v115, %v442
  %v444 = vpop.f32.mrf.mxu0
  %445 = vdwg.mxu0
  %v446 = vmax.f32 %v323, 0.0
  %v447 = vmax.f32 %v325, 0.0
  %v448 = vmax.f32 %v328, 0.0
  %v449 = vmax.f32 %v330, 0.0
  %v450 = vmax.f32 %v333, 0.0
  %v451 = vmax.f32 %v335, 0.0
  %v452 = vmax.f32 %v338, 0.0
  %v453 = vmax.f32 %v340, 0.0
  %v454 = vmax.f32 %v343, 0.0
  %v455 = vmax.f32 %v345, 0.0
  %v456 = vmax.f32 %v348, 0.0
  %v457 = vmax.f32 %v350, 0.0
  %v458 = vmax.f32 %v353, 0.0
  %v459 = vmax.f32 %v355, 0.0
  %v460 = vmax.f32 %v358, 0.0
  %v461 = vmax.f32 %v360, 0.0
  %v462 = vmax.f32 %v363, 0.0
  %v463 = vmax.f32 %v365, 0.0
  %v464 = vmax.f32 %v368, 0.0
  %v465 = vmax.f32 %v370, 0.0
  %v466 = vmax.f32 %v373, 0.0
  %v467 = vmax.f32 %v375, 0.0
  %v468 = vmax.f32 %v378, 0.0
  %v469 = vmax.f32 %v380, 0.0
  %v470 = vmax.f32 %v383, 0.0
  %v471 = vmax.f32 %v385, 0.0
  %v472 = vmax.f32 %v388, 0.0
  %v473 = vmax.f32 %v390, 0.0
  %v474 = vmax.f32 %v393, 0.0
  %v475 = vmax.f32 %v395, 0.0
  %v476 = vmax.f32 %v398, 0.0
  %v477 = vmax.f32 %v400, 0.0
  %v478 = vmax.f32 %v403, 0.0
  %v479 = vmax.f32 %v405, 0.0
  %v480 = vmax.f32 %v408, 0.0
  %v481 = vmax.f32 %v410, 0.0
  %v482 = vmax.f32 %v413, 0.0
  %v483 = vmax.f32 %v415, 0.0
  %v484 = vmax.f32 %v418, 0.0
  %v485 = vmax.f32 %v420, 0.0
  %v486 = vmax.f32 %v423, 0.0
  %v487 = vmax.f32 %v425, 0.0
  %v488 = vmax.f32 %v428, 0.0
  %v489 = vmax.f32 %v430, 0.0
  %v490 = vmax.f32 %v433, 0.0
  %v491 = vmax.f32 %v435, 0.0
  %v492 = vmax.f32 %v438, 0.0
  %v493 = vmax.f32 %v440, 0.0
  %v494 = vmax.f32 %v443, 0.0
  %v495 = vlaneseq
  %v496 = vshrl.u32 %v495, 7
  %v497 = vadd.s32 %v496, 8
  %v498 = vadd.s32 %v496, 16
  %v499 = vadd.s32 %v496, 24
  %v500 = vadd.s32 %v496, 32
  %v501 = vadd.s32 %v496, 40
  %v502 = vadd.s32 %v496, 48
  %v503 = vadd.s32 %v496, 56
  %v504 = vadd.s32 %v496, 64
  %v505 = vadd.s32 %v496, 72
  %v506 = vadd.s32 %v496, 80
  %v507 = vadd.s32 %v496, 88
  %v508 = vadd.s32 %v496, 96
  %v509 = vadd.s32 %v496, 104
  %v510 = vadd.s32 %v496, 112
  %v511 = vadd.s32 %v496, 120
  %v512 = vadd.s32 %v496, 128
  %v513 = vadd.s32 %v496, 136
  %v514 = vadd.s32 %v496, 144
  %v515 = vadd.s32 %v496, 152
  %v516 = vadd.s32 %v496, 160
  %v517 = vadd.s32 %v496, 168
  %v518 = vadd.s32 %v496, 176
  %v519 = vadd.s32 %v496, 184
  %v520 = vadd.s32 %v496, 192
  %v521 = vadd.s32 %v496, 200
  %v522 = vadd.s32 %v496, 208
  %v523 = vadd.s32 %v496, 216
  %v524 = vadd.s32 %v496, 224
  %v525 = vadd.s32 %v496, 232
  %v526 = vadd.s32 %v496, 240
  %v527 = vadd.s32 %v496, 248
  %v528 = vadd.s32 %v496, 256
  %v529 = vadd.s32 %v496, 264
  %v530 = vadd.s32 %v496, 272
  %v531 = vadd.s32 %v496, 280
  %v532 = vadd.s32 %v496, 288
  %v533 = vadd.s32 %v496, 296
  %v534 = vadd.s32 %v496, 304
  %v535 = vadd.s32 %v496, 312
  %v536 = vadd.s32 %v496, 320
  %v537 = vadd.s32 %v496, 328
  %v538 = vadd.s32 %v496, 336
  %v539 = vadd.s32 %v496, 344
  %v540 = vadd.s32 %v496, 352
  %v541 = vadd.s32 %v496, 360
  %v542 = vadd.s32 %v496, 368
  %v543 = vadd.s32 %v496, 376
  %v544 = vadd.s32 %v496, 384
  %vm545 = vcmp.ge.s32.totalorder %v496, 0
  %vm546 = vcmp.ge.s32.totalorder %v497, 0
  %vm547 = vcmp.ge.s32.totalorder %v498, 0
  %vm548 = vcmp.ge.s32.totalorder %v499, 0
  %vm549 = vcmp.ge.s32.totalorder %v500, 0
  %vm550 = vcmp.ge.s32.totalorder %v501, 0
  %vm551 = vcmp.ge.s32.totalorder %v502, 0
  %vm552 = vcmp.ge.s32.totalorder %v503, 0
  %vm553 = vcmp.ge.s32.totalorder %v504, 0
  %vm554 = vcmp.ge.s32.totalorder %v505, 0
  %vm555 = vcmp.ge.s32.totalorder %v506, 0
  %vm556 = vcmp.ge.s32.totalorder %v507, 0
  %vm557 = vcmp.ge.s32.totalorder %v508, 0
  %vm558 = vcmp.ge.s32.totalorder %v509, 0
  %vm559 = vcmp.ge.s32.totalorder %v510, 0
  %vm560 = vcmp.ge.s32.totalorder %v511, 0
  %vm561 = vcmp.ge.s32.totalorder %v512, 0
  %vm562 = vcmp.ge.s32.totalorder %v513, 0
  %vm563 = vcmp.ge.s32.totalorder %v514, 0
  %vm564 = vcmp.ge.s32.totalorder %v515, 0
  %vm565 = vcmp.ge.s32.totalorder %v516, 0
  %vm566 = vcmp.ge.s32.totalorder %v517, 0
  %vm567 = vcmp.ge.s32.totalorder %v518, 0
  %vm568 = vcmp.ge.s32.totalorder %v519, 0
  %vm569 = vcmp.ge.s32.totalorder %v520, 0
  %vm570 = vcmp.ge.s32.totalorder %v521, 0
  %vm571 = vcmp.ge.s32.totalorder %v522, 0
  %vm572 = vcmp.ge.s32.totalorder %v523, 0
  %vm573 = vcmp.ge.s32.totalorder %v524, 0
  %vm574 = vcmp.ge.s32.totalorder %v525, 0
  %vm575 = vcmp.ge.s32.totalorder %v526, 0
  %vm576 = vcmp.ge.s32.totalorder %v527, 0
  %vm577 = vcmp.ge.s32.totalorder %v528, 0
  %vm578 = vcmp.ge.s32.totalorder %v529, 0
  %vm579 = vcmp.ge.s32.totalorder %v530, 0
  %vm580 = vcmp.ge.s32.totalorder %v531, 0
  %vm581 = vcmp.ge.s32.totalorder %v532, 0
  %vm582 = vcmp.ge.s32.totalorder %v533, 0
  %vm583 = vcmp.ge.s32.totalorder %v534, 0
  %vm584 = vcmp.ge.s32.totalorder %v535, 0
  %vm585 = vcmp.ge.s32.totalorder %v536, 0
  %vm586 = vcmp.ge.s32.totalorder %v537, 0
  %vm587 = vcmp.ge.s32.totalorder %v538, 0
  %vm588 = vcmp.ge.s32.totalorder %v539, 0
  %vm589 = vcmp.ge.s32.totalorder %v540, 0
  %vm590 = vcmp.ge.s32.totalorder %v541, 0
  %vm591 = vcmp.ge.s32.totalorder %v542, 0
  %vm592 = vcmp.ge.s32.totalorder %v543, 0
  %vm593 = vcmp.ge.s32.totalorder %v544, 0
  %vm594 = vcmp.lt.s32.totalorder %v496, 196
  %vm595 = vcmp.lt.s32.totalorder %v497, 196
  %vm596 = vcmp.lt.s32.totalorder %v498, 196
  %vm597 = vcmp.lt.s32.totalorder %v499, 196
  %vm598 = vcmp.lt.s32.totalorder %v500, 196
  %vm599 = vcmp.lt.s32.totalorder %v501, 196
  %vm600 = vcmp.lt.s32.totalorder %v502, 196
  %vm601 = vcmp.lt.s32.totalorder %v503, 196
  %vm602 = vcmp.lt.s32.totalorder %v504, 196
  %vm603 = vcmp.lt.s32.totalorder %v505, 196
  %vm604 = vcmp.lt.s32.totalorder %v506, 196
  %vm605 = vcmp.lt.s32.totalorder %v507, 196
  %vm606 = vcmp.lt.s32.totalorder %v508, 196
  %vm607 = vcmp.lt.s32.totalorder %v509, 196
  %vm608 = vcmp.lt.s32.totalorder %v510, 196
  %vm609 = vcmp.lt.s32.totalorder %v511, 196
  %vm610 = vcmp.lt.s32.totalorder %v512, 196
  %vm611 = vcmp.lt.s32.totalorder %v513, 196
  %vm612 = vcmp.lt.s32.totalorder %v514, 196
  %vm613 = vcmp.lt.s32.totalorder %v515, 196
  %vm614 = vcmp.lt.s32.totalorder %v516, 196
  %vm615 = vcmp.lt.s32.totalorder %v517, 196
  %vm616 = vcmp.lt.s32.totalorder %v518, 196
  %vm617 = vcmp.lt.s32.totalorder %v519, 196
  %vm618 = vcmp.lt.s32.totalorder %v520, 196
  %vm619 = vcmp.lt.s32.totalorder %v521, 196
  %vm620 = vcmp.lt.s32.totalorder %v522, 196
  %vm621 = vcmp.lt.s32.totalorder %v523, 196
  %vm622 = vcmp.lt.s32.totalorder %v524, 196
  %vm623 = vcmp.lt.s32.totalorder %v525, 196
  %vm624 = vcmp.lt.s32.totalorder %v526, 196
  %vm625 = vcmp.lt.s32.totalorder %v527, 196
  %vm626 = vcmp.lt.s32.totalorder %v528, 196
  %vm627 = vcmp.lt.s32.totalorder %v529, 196
  %vm628 = vcmp.lt.s32.totalorder %v530, 196
  %vm629 = vcmp.lt.s32.totalorder %v531, 196
  %vm630 = vcmp.lt.s32.totalorder %v532, 196
  %vm631 = vcmp.lt.s32.totalorder %v533, 196
  %vm632 = vcmp.lt.s32.totalorder %v534, 196
  %vm633 = vcmp.lt.s32.totalorder %v535, 196
  %vm634 = vcmp.lt.s32.totalorder %v536, 196
  %vm635 = vcmp.lt.s32.totalorder %v537, 196
  %vm636 = vcmp.lt.s32.totalorder %v538, 196
  %vm637 = vcmp.lt.s32.totalorder %v539, 196
  %vm638 = vcmp.lt.s32.totalorder %v540, 196
  %vm639 = vcmp.lt.s32.totalorder %v541, 196
  %vm640 = vcmp.lt.s32.totalorder %v542, 196
  %vm641 = vcmp.lt.s32.totalorder %v543, 196
  %vm642 = vcmp.lt.s32.totalorder %v544, 196
  %vm643 = vmand %vm545, %vm594
  %vm644 = vmand %vm546, %vm595
  %vm645 = vmand %vm547, %vm596
  %vm646 = vmand %vm548, %vm597
  %vm647 = vmand %vm549, %vm598
  %vm648 = vmand %vm550, %vm599
  %vm649 = vmand %vm551, %vm600
  %vm650 = vmand %vm552, %vm601
  %vm651 = vmand %vm553, %vm602
  %vm652 = vmand %vm554, %vm603
  %vm653 = vmand %vm555, %vm604
  %vm654 = vmand %vm556, %vm605
  %vm655 = vmand %vm557, %vm606
  %vm656 = vmand %vm558, %vm607
  %vm657 = vmand %vm559, %vm608
  %vm658 = vmand %vm560, %vm609
  %vm659 = vmand %vm561, %vm610
  %vm660 = vmand %vm562, %vm611
  %vm661 = vmand %vm563, %vm612
  %vm662 = vmand %vm564, %vm613
  %vm663 = vmand %vm565, %vm614
  %vm664 = vmand %vm566, %vm615
  %vm665 = vmand %vm567, %vm616
  %vm666 = vmand %vm568, %vm617
  %vm667 = vmand %vm569, %vm618
  %vm668 = vmand %vm570, %vm619
  %vm669 = vmand %vm571, %vm620
  %vm670 = vmand %vm572, %vm621
  %vm671 = vmand %vm573, %vm622
  %vm672 = vmand %vm574, %vm623
  %vm673 = vmand %vm575, %vm624
  %vm674 = vmand %vm576, %vm625
  %vm675 = vmand %vm577, %vm626
  %vm676 = vmand %vm578, %vm627
  %vm677 = vmand %vm579, %vm628
  %vm678 = vmand %vm580, %vm629
  %vm679 = vmand %vm581, %vm630
  %vm680 = vmand %vm582, %vm631
  %vm681 = vmand %vm583, %vm632
  %vm682 = vmand %vm584, %vm633
  %vm683 = vmand %vm585, %vm634
  %vm684 = vmand %vm586, %vm635
  %vm685 = vmand %vm587, %vm636
  %vm686 = vmand %vm588, %vm637
  %vm687 = vmand %vm589, %vm638
  %vm688 = vmand %vm590, %vm639
  %vm689 = vmand %vm591, %vm640
  %vm690 = vmand %vm592, %vm641
  %vm691 = vmand %vm593, %vm642
  %v692 = vsel %vm643, %v446, 0.0
  %v693 = vsel %vm644, %v447, 0.0
  %v694 = vsel %vm645, %v448, 0.0
  %v695 = vsel %vm646, %v449, 0.0
  %v696 = vsel %vm647, %v450, 0.0
  %v697 = vsel %vm648, %v451, 0.0
  %v698 = vsel %vm649, %v452, 0.0
  %v699 = vsel %vm650, %v453, 0.0
  %v700 = vsel %vm651, %v454, 0.0
  %v701 = vsel %vm652, %v455, 0.0
  %v702 = vsel %vm653, %v456, 0.0
  %v703 = vsel %vm654, %v457, 0.0
  %v704 = vsel %vm655, %v458, 0.0
  %v705 = vsel %vm656, %v459, 0.0
  %v706 = vsel %vm657, %v460, 0.0
  %v707 = vsel %vm658, %v461, 0.0
  %v708 = vsel %vm659, %v462, 0.0
  %v709 = vsel %vm660, %v463, 0.0
  %v710 = vsel %vm661, %v464, 0.0
  %v711 = vsel %vm662, %v465, 0.0
  %v712 = vsel %vm663, %v466, 0.0
  %v713 = vsel %vm664, %v467, 0.0
  %v714 = vsel %vm665, %v468, 0.0
  %v715 = vsel %vm666, %v469, 0.0
  %v716 = vsel %vm667, %v470, 0.0
  %v717 = vsel %vm668, %v471, 0.0
  %v718 = vsel %vm669, %v472, 0.0
  %v719 = vsel %vm670, %v473, 0.0
  %v720 = vsel %vm671, %v474, 0.0
  %v721 = vsel %vm672, %v475, 0.0
  %v722 = vsel %vm673, %v476, 0.0
  %v723 = vsel %vm674, %v477, 0.0
  %v724 = vsel %vm675, %v478, 0.0
  %v725 = vsel %vm676, %v479, 0.0
  %v726 = vsel %vm677, %v480, 0.0
  %v727 = vsel %vm678, %v481, 0.0
  %v728 = vsel %vm679, %v482, 0.0
  %v729 = vsel %vm680, %v483, 0.0
  %v730 = vsel %vm681, %v484, 0.0
  %v731 = vsel %vm682, %v485, 0.0
  %v732 = vsel %vm683, %v486, 0.0
  %v733 = vsel %vm684, %v487, 0.0
  %v734 = vsel %vm685, %v488, 0.0
  %v735 = vsel %vm686, %v489, 0.0
  %v736 = vsel %vm687, %v490, 0.0
  %v737 = vsel %vm688, %v491, 0.0
  %v738 = vsel %vm689, %v492, 0.0
  %v739 = vsel %vm690, %v493, 0.0
  %v740 = vsel %vm691, %v494, 0.0
  %vm741 = vcmask 261120
  %v742 = vsel %vm741, %v692, 0.0
  %v743 = vsel %vm741, %v693, 0.0
  %v744 = vadd.f32 %v742, %v743
  %v745 = vsel %vm741, %v694, 0.0
  %v746 = vadd.f32 %v744, %v745
  %v747 = vsel %vm741, %v695, 0.0
  %v748 = vadd.f32 %v746, %v747
  %v749 = vsel %vm741, %v696, 0.0
  %v750 = vadd.f32 %v748, %v749
  %v751 = vsel %vm741, %v697, 0.0
  %v752 = vadd.f32 %v750, %v751
  %v753 = vsel %vm741, %v698, 0.0
  %v754 = vadd.f32 %v752, %v753
  %v755 = vsel %vm741, %v699, 0.0
  %v756 = vadd.f32 %v754, %v755
  %v757 = vsel %vm741, %v700, 0.0
  %v758 = vadd.f32 %v756, %v757
  %v759 = vsel %vm741, %v701, 0.0
  %v760 = vadd.f32 %v758, %v759
  %v761 = vsel %vm741, %v702, 0.0
  %v762 = vadd.f32 %v760, %v761
  %v763 = vsel %vm741, %v703, 0.0
  %v764 = vadd.f32 %v762, %v763
  %v765 = vsel %vm741, %v704, 0.0
  %v766 = vadd.f32 %v764, %v765
  %v767 = vsel %vm741, %v705, 0.0
  %v768 = vadd.f32 %v766, %v767
  %v769 = vsel %vm741, %v706, 0.0
  %v770 = vadd.f32 %v768, %v769
  %v771 = vsel %vm741, %v707, 0.0
  %v772 = vadd.f32 %v770, %v771
  %v773 = vsel %vm741, %v708, 0.0
  %v774 = vadd.f32 %v772, %v773
  %v775 = vsel %vm741, %v709, 0.0
  %v776 = vadd.f32 %v774, %v775
  %v777 = vsel %vm741, %v710, 0.0
  %v778 = vadd.f32 %v776, %v777
  %v779 = vsel %vm741, %v711, 0.0
  %v780 = vadd.f32 %v778, %v779
  %v781 = vsel %vm741, %v712, 0.0
  %v782 = vadd.f32 %v780, %v781
  %v783 = vsel %vm741, %v713, 0.0
  %v784 = vadd.f32 %v782, %v783
  %v785 = vsel %vm741, %v714, 0.0
  %v786 = vadd.f32 %v784, %v785
  %v787 = vsel %vm741, %v715, 0.0
  %v788 = vadd.f32 %v786, %v787
  %v789 = vsel %vm741, %v716, 0.0
  %v790 = vadd.f32 %v788, %v789
  %v791 = vsel %vm741, %v717, 0.0
  %v792 = vadd.f32 %v790, %v791
  %v793 = vsel %vm741, %v718, 0.0
  %v794 = vadd.f32 %v792, %v793
  %v795 = vsel %vm741, %v719, 0.0
  %v796 = vadd.f32 %v794, %v795
  %v797 = vsel %vm741, %v720, 0.0
  %v798 = vadd.f32 %v796, %v797
  %v799 = vsel %vm741, %v721, 0.0
  %v800 = vadd.f32 %v798, %v799
  %v801 = vsel %vm741, %v722, 0.0
  %v802 = vadd.f32 %v800, %v801
  %v803 = vsel %vm741, %v723, 0.0
  %v804 = vadd.f32 %v802, %v803
  %v805 = vsel %vm741, %v724, 0.0
  %v806 = vadd.f32 %v804, %v805
  %v807 = vsel %vm741, %v725, 0.0
  %v808 = vadd.f32 %v806, %v807
  %v809 = vsel %vm741, %v726, 0.0
  %v810 = vadd.f32 %v808, %v809
  %v811 = vsel %vm741, %v727, 0.0
  %v812 = vadd.f32 %v810, %v811
  %v813 = vsel %vm741, %v728, 0.0
  %v814 = vadd.f32 %v812, %v813
  %v815 = vsel %vm741, %v729, 0.0
  %v816 = vadd.f32 %v814, %v815
  %v817 = vsel %vm741, %v730, 0.0
  %v818 = vadd.f32 %v816, %v817
  %v819 = vsel %vm741, %v731, 0.0
  %v820 = vadd.f32 %v818, %v819
  %v821 = vsel %vm741, %v732, 0.0
  %v822 = vadd.f32 %v820, %v821
  %v823 = vsel %vm741, %v733, 0.0
  %v824 = vadd.f32 %v822, %v823
  %v825 = vsel %vm741, %v734, 0.0
  %v826 = vadd.f32 %v824, %v825
  %v827 = vsel %vm741, %v735, 0.0
  %v828 = vadd.f32 %v826, %v827
  %v829 = vsel %vm741, %v736, 0.0
  %v830 = vadd.f32 %v828, %v829
  %v831 = vsel %vm741, %v737, 0.0
  %v832 = vadd.f32 %v830, %v831
  %v833 = vsel %vm741, %v738, 0.0
  %v834 = vadd.f32 %v832, %v833
  %v835 = vsel %vm741, %v739, 0.0
  %v836 = vadd.f32 %v834, %v835
  %v837 = vsel %vm741, %v740, 0.0
  %v838 = vadd.f32 %v836, %v837
  %v839 = vrot.slane %v838, 4
  %v840 = vadd.f32 %v838, %v839
  %v841 = vrot.slane %v840, 2
  %v842 = vadd.f32 %v840, %v841
  %v843 = vrot.slane %v842, 1
  %v844 = vadd.f32 %v842, %v843
  %vm845 = vcmp.ge.s32.totalorder %v496, 196
  %vm846 = vcmp.ge.s32.totalorder %v497, 196
  %vm847 = vcmp.ge.s32.totalorder %v498, 196
  %vm848 = vcmp.ge.s32.totalorder %v499, 196
  %vm849 = vcmp.ge.s32.totalorder %v500, 196
  %vm850 = vcmp.ge.s32.totalorder %v501, 196
  %vm851 = vcmp.ge.s32.totalorder %v502, 196
  %vm852 = vcmp.ge.s32.totalorder %v503, 196
  %vm853 = vcmp.ge.s32.totalorder %v504, 196
  %vm854 = vcmp.ge.s32.totalorder %v505, 196
  %vm855 = vcmp.ge.s32.totalorder %v506, 196
  %vm856 = vcmp.ge.s32.totalorder %v507, 196
  %vm857 = vcmp.ge.s32.totalorder %v508, 196
  %vm858 = vcmp.ge.s32.totalorder %v509, 196
  %vm859 = vcmp.ge.s32.totalorder %v510, 196
  %vm860 = vcmp.ge.s32.totalorder %v511, 196
  %vm861 = vcmp.ge.s32.totalorder %v512, 196
  %vm862 = vcmp.ge.s32.totalorder %v513, 196
  %vm863 = vcmp.ge.s32.totalorder %v514, 196
  %vm864 = vcmp.ge.s32.totalorder %v515, 196
  %vm865 = vcmp.ge.s32.totalorder %v516, 196
  %vm866 = vcmp.ge.s32.totalorder %v517, 196
  %vm867 = vcmp.ge.s32.totalorder %v518, 196
  %vm868 = vcmp.ge.s32.totalorder %v519, 196
  %vm869 = vcmp.ge.s32.totalorder %v520, 196
  %vm870 = vcmp.ge.s32.totalorder %v521, 196
  %vm871 = vcmp.ge.s32.totalorder %v522, 196
  %vm872 = vcmp.ge.s32.totalorder %v523, 196
  %vm873 = vcmp.ge.s32.totalorder %v524, 196
  %vm874 = vcmp.ge.s32.totalorder %v525, 196
  %vm875 = vcmp.ge.s32.totalorder %v526, 196
  %vm876 = vcmp.ge.s32.totalorder %v527, 196
  %vm877 = vcmp.ge.s32.totalorder %v528, 196
  %vm878 = vcmp.ge.s32.totalorder %v529, 196
  %vm879 = vcmp.ge.s32.totalorder %v530, 196
  %vm880 = vcmp.ge.s32.totalorder %v531, 196
  %vm881 = vcmp.ge.s32.totalorder %v532, 196
  %vm882 = vcmp.ge.s32.totalorder %v533, 196
  %vm883 = vcmp.ge.s32.totalorder %v534, 196
  %vm884 = vcmp.ge.s32.totalorder %v535, 196
  %vm885 = vcmp.ge.s32.totalorder %v536, 196
  %vm886 = vcmp.ge.s32.totalorder %v537, 196
  %vm887 = vcmp.ge.s32.totalorder %v538, 196
  %vm888 = vcmp.ge.s32.totalorder %v539, 196
  %vm889 = vcmp.ge.s32.totalorder %v540, 196
  %vm890 = vcmp.ge.s32.totalorder %v541, 196
  %vm891 = vcmp.ge.s32.totalorder %v542, 196
  %vm892 = vcmp.ge.s32.totalorder %v543, 196
  %vm893 = vcmp.ge.s32.totalorder %v544, 196
  %vm894 = vcmp.lt.s32.totalorder %v496, 392
  %vm895 = vcmp.lt.s32.totalorder %v497, 392
  %vm896 = vcmp.lt.s32.totalorder %v498, 392
  %vm897 = vcmp.lt.s32.totalorder %v499, 392
  %vm898 = vcmp.lt.s32.totalorder %v500, 392
  %vm899 = vcmp.lt.s32.totalorder %v501, 392
  %vm900 = vcmp.lt.s32.totalorder %v502, 392
  %vm901 = vcmp.lt.s32.totalorder %v503, 392
  %vm902 = vcmp.lt.s32.totalorder %v504, 392
  %vm903 = vcmp.lt.s32.totalorder %v505, 392
  %vm904 = vcmp.lt.s32.totalorder %v506, 392
  %vm905 = vcmp.lt.s32.totalorder %v507, 392
  %vm906 = vcmp.lt.s32.totalorder %v508, 392
  %vm907 = vcmp.lt.s32.totalorder %v509, 392
  %vm908 = vcmp.lt.s32.totalorder %v510, 392
  %vm909 = vcmp.lt.s32.totalorder %v511, 392
  %vm910 = vcmp.lt.s32.totalorder %v512, 392
  %vm911 = vcmp.lt.s32.totalorder %v513, 392
  %vm912 = vcmp.lt.s32.totalorder %v514, 392
  %vm913 = vcmp.lt.s32.totalorder %v515, 392
  %vm914 = vcmp.lt.s32.totalorder %v516, 392
  %vm915 = vcmp.lt.s32.totalorder %v517, 392
  %vm916 = vcmp.lt.s32.totalorder %v518, 392
  %vm917 = vcmp.lt.s32.totalorder %v519, 392
  %vm918 = vcmp.lt.s32.totalorder %v520, 392
  %vm919 = vcmp.lt.s32.totalorder %v521, 392
  %vm920 = vcmp.lt.s32.totalorder %v522, 392
  %vm921 = vcmp.lt.s32.totalorder %v523, 392
  %vm922 = vcmp.lt.s32.totalorder %v524, 392
  %vm923 = vcmp.lt.s32.totalorder %v525, 392
  %vm924 = vcmp.lt.s32.totalorder %v526, 392
  %vm925 = vcmp.lt.s32.totalorder %v527, 392
  %vm926 = vcmp.lt.s32.totalorder %v528, 392
  %vm927 = vcmp.lt.s32.totalorder %v529, 392
  %vm928 = vcmp.lt.s32.totalorder %v530, 392
  %vm929 = vcmp.lt.s32.totalorder %v531, 392
  %vm930 = vcmp.lt.s32.totalorder %v532, 392
  %vm931 = vcmp.lt.s32.totalorder %v533, 392
  %vm932 = vcmp.lt.s32.totalorder %v534, 392
  %vm933 = vcmp.lt.s32.totalorder %v535, 392
  %vm934 = vcmp.lt.s32.totalorder %v536, 392
  %vm935 = vcmp.lt.s32.totalorder %v537, 392
  %vm936 = vcmp.lt.s32.totalorder %v538, 392
  %vm937 = vcmp.lt.s32.totalorder %v539, 392
  %vm938 = vcmp.lt.s32.totalorder %v540, 392
  %vm939 = vcmp.lt.s32.totalorder %v541, 392
  %vm940 = vcmp.lt.s32.totalorder %v542, 392
  %vm941 = vcmp.lt.s32.totalorder %v543, 392
  %vm942 = vcmp.lt.s32.totalorder %v544, 392
  %vm943 = vmand %vm845, %vm894
  %vm944 = vmand %vm846, %vm895
  %vm945 = vmand %vm847, %vm896
  %vm946 = vmand %vm848, %vm897
  %vm947 = vmand %vm849, %vm898
  %vm948 = vmand %vm850, %vm899
  %vm949 = vmand %vm851, %vm900
  %vm950 = vmand %vm852, %vm901
  %vm951 = vmand %vm853, %vm902
  %vm952 = vmand %vm854, %vm903
  %vm953 = vmand %vm855, %vm904
  %vm954 = vmand %vm856, %vm905
  %vm955 = vmand %vm857, %vm906
  %vm956 = vmand %vm858, %vm907
  %vm957 = vmand %vm859, %vm908
  %vm958 = vmand %vm860, %vm909
  %vm959 = vmand %vm861, %vm910
  %vm960 = vmand %vm862, %vm911
  %vm961 = vmand %vm863, %vm912
  %vm962 = vmand %vm864, %vm913
  %vm963 = vmand %vm865, %vm914
  %vm964 = vmand %vm866, %vm915
  %vm965 = vmand %vm867, %vm916
  %vm966 = vmand %vm868, %vm917
  %vm967 = vmand %vm869, %vm918
  %vm968 = vmand %vm870, %vm919
  %vm969 = vmand %vm871, %vm920
  %vm970 = vmand %vm872, %vm921
  %vm971 = vmand %vm873, %vm922
  %vm972 = vmand %vm874, %vm923
  %vm973 = vmand %vm875, %vm924
  %vm974 = vmand %vm876, %vm925
  %vm975 = vmand %vm877, %vm926
  %vm976 = vmand %vm878, %vm927
  %vm977 = vmand %vm879, %vm928
  %vm978 = vmand %vm880, %vm929
  %vm979 = vmand %vm881, %vm930
  %vm980 = vmand %vm882, %vm931
  %vm981 = vmand %vm883, %vm932
  %vm982 = vmand %vm884, %vm933
  %vm983 = vmand %vm885, %vm934
  %vm984 = vmand %vm886, %vm935
  %vm985 = vmand %vm887, %vm936
  %vm986 = vmand %vm888, %vm937
  %vm987 = vmand %vm889, %vm938
  %vm988 = vmand %vm890, %vm939
  %vm989 = vmand %vm891, %vm940
  %vm990 = vmand %vm892, %vm941
  %vm991 = vmand %vm893, %vm942
  %v992 = vsel %vm943, %v446, 0.0
  %v993 = vsel %vm944, %v447, 0.0
  %v994 = vsel %vm945, %v448, 0.0
  %v995 = vsel %vm946, %v449, 0.0
  %v996 = vsel %vm947, %v450, 0.0
  %v997 = vsel %vm948, %v451, 0.0
  %v998 = vsel %vm949, %v452, 0.0
  %v999 = vsel %vm950, %v453, 0.0
  %v1000 = vsel %vm951, %v454, 0.0
  %v1001 = vsel %vm952, %v455, 0.0
  %v1002 = vsel %vm953, %v456, 0.0
  %v1003 = vsel %vm954, %v457, 0.0
  %v1004 = vsel %vm955, %v458, 0.0
  %v1005 = vsel %vm956, %v459, 0.0
  %v1006 = vsel %vm957, %v460, 0.0
  %v1007 = vsel %vm958, %v461, 0.0
  %v1008 = vsel %vm959, %v462, 0.0
  %v1009 = vsel %vm960, %v463, 0.0
  %v1010 = vsel %vm961, %v464, 0.0
  %v1011 = vsel %vm962, %v465, 0.0
  %v1012 = vsel %vm963, %v466, 0.0
  %v1013 = vsel %vm964, %v467, 0.0
  %v1014 = vsel %vm965, %v468, 0.0
  %v1015 = vsel %vm966, %v469, 0.0
  %v1016 = vsel %vm967, %v470, 0.0
  %v1017 = vsel %vm968, %v471, 0.0
  %v1018 = vsel %vm969, %v472, 0.0
  %v1019 = vsel %vm970, %v473, 0.0
  %v1020 = vsel %vm971, %v474, 0.0
  %v1021 = vsel %vm972, %v475, 0.0
  %v1022 = vsel %vm973, %v476, 0.0
  %v1023 = vsel %vm974, %v477, 0.0
  %v1024 = vsel %vm975, %v478, 0.0
  %v1025 = vsel %vm976, %v479, 0.0
  %v1026 = vsel %vm977, %v480, 0.0
  %v1027 = vsel %vm978, %v481, 0.0
  %v1028 = vsel %vm979, %v482, 0.0
  %v1029 = vsel %vm980, %v483, 0.0
  %v1030 = vsel %vm981, %v484, 0.0
  %v1031 = vsel %vm982, %v485, 0.0
  %v1032 = vsel %vm983, %v486, 0.0
  %v1033 = vsel %vm984, %v487, 0.0
  %v1034 = vsel %vm985, %v488, 0.0
  %v1035 = vsel %vm986, %v489, 0.0
  %v1036 = vsel %vm987, %v490, 0.0
  %v1037 = vsel %vm988, %v491, 0.0
  %v1038 = vsel %vm989, %v492, 0.0
  %v1039 = vsel %vm990, %v493, 0.0
  %v1040 = vsel %vm991, %v494, 0.0
  %v1041 = vsel %vm741, %v992, 0.0
  %v1042 = vsel %vm741, %v993, 0.0
  %v1043 = vadd.f32 %v1041, %v1042
  %v1044 = vsel %vm741, %v994, 0.0
  %v1045 = vadd.f32 %v1043, %v1044
  %v1046 = vsel %vm741, %v995, 0.0
  %v1047 = vadd.f32 %v1045, %v1046
  %v1048 = vsel %vm741, %v996, 0.0
  %v1049 = vadd.f32 %v1047, %v1048
  %v1050 = vsel %vm741, %v997, 0.0
  %v1051 = vadd.f32 %v1049, %v1050
  %v1052 = vsel %vm741, %v998, 0.0
  %v1053 = vadd.f32 %v1051, %v1052
  %v1054 = vsel %vm741, %v999, 0.0
  %v1055 = vadd.f32 %v1053, %v1054
  %v1056 = vsel %vm741, %v1000, 0.0
  %v1057 = vadd.f32 %v1055, %v1056
  %v1058 = vsel %vm741, %v1001, 0.0
  %v1059 = vadd.f32 %v1057, %v1058
  %v1060 = vsel %vm741, %v1002, 0.0
  %v1061 = vadd.f32 %v1059, %v1060
  %v1062 = vsel %vm741, %v1003, 0.0
  %v1063 = vadd.f32 %v1061, %v1062
  %v1064 = vsel %vm741, %v1004, 0.0
  %v1065 = vadd.f32 %v1063, %v1064
  %v1066 = vsel %vm741, %v1005, 0.0
  %v1067 = vadd.f32 %v1065, %v1066
  %v1068 = vsel %vm741, %v1006, 0.0
  %v1069 = vadd.f32 %v1067, %v1068
  %v1070 = vsel %vm741, %v1007, 0.0
  %v1071 = vadd.f32 %v1069, %v1070
  %v1072 = vsel %vm741, %v1008, 0.0
  %v1073 = vadd.f32 %v1071, %v1072
  %v1074 = vsel %vm741, %v1009, 0.0
  %v1075 = vadd.f32 %v1073, %v1074
  %v1076 = vsel %vm741, %v1010, 0.0
  %v1077 = vadd.f32 %v1075, %v1076
  %v1078 = vsel %vm741, %v1011, 0.0
  %v1079 = vadd.f32 %v1077, %v1078
  %v1080 = vsel %vm741, %v1012, 0.0
  %v1081 = vadd.f32 %v1079, %v1080
  %v1082 = vsel %vm741, %v1013, 0.0
  %v1083 = vadd.f32 %v1081, %v1082
  %v1084 = vsel %vm741, %v1014, 0.0
  %v1085 = vadd.f32 %v1083, %v1084
  %v1086 = vsel %vm741, %v1015, 0.0
  %v1087 = vadd.f32 %v1085, %v1086
  %v1088 = vsel %vm741, %v1016, 0.0
  %v1089 = vadd.f32 %v1087, %v1088
  %v1090 = vsel %vm741, %v1017, 0.0
  %v1091 = vadd.f32 %v1089, %v1090
  %v1092 = vsel %vm741, %v1018, 0.0
  %v1093 = vadd.f32 %v1091, %v1092
  %v1094 = vsel %vm741, %v1019, 0.0
  %v1095 = vadd.f32 %v1093, %v1094
  %v1096 = vsel %vm741, %v1020, 0.0
  %v1097 = vadd.f32 %v1095, %v1096
  %v1098 = vsel %vm741, %v1021, 0.0
  %v1099 = vadd.f32 %v1097, %v1098
  %v1100 = vsel %vm741, %v1022, 0.0
  %v1101 = vadd.f32 %v1099, %v1100
  %v1102 = vsel %vm741, %v1023, 0.0
  %v1103 = vadd.f32 %v1101, %v1102
  %v1104 = vsel %vm741, %v1024, 0.0
  %v1105 = vadd.f32 %v1103, %v1104
  %v1106 = vsel %vm741, %v1025, 0.0
  %v1107 = vadd.f32 %v1105, %v1106
  %v1108 = vsel %vm741, %v1026, 0.0
  %v1109 = vadd.f32 %v1107, %v1108
  %v1110 = vsel %vm741, %v1027, 0.0
  %v1111 = vadd.f32 %v1109, %v1110
  %v1112 = vsel %vm741, %v1028, 0.0
  %v1113 = vadd.f32 %v1111, %v1112
  %v1114 = vsel %vm741, %v1029, 0.0
  %v1115 = vadd.f32 %v1113, %v1114
  %v1116 = vsel %vm741, %v1030, 0.0
  %v1117 = vadd.f32 %v1115, %v1116
  %v1118 = vsel %vm741, %v1031, 0.0
  %v1119 = vadd.f32 %v1117, %v1118
  %v1120 = vsel %vm741, %v1032, 0.0
  %v1121 = vadd.f32 %v1119, %v1120
  %v1122 = vsel %vm741, %v1033, 0.0
  %v1123 = vadd.f32 %v1121, %v1122
  %v1124 = vsel %vm741, %v1034, 0.0
  %v1125 = vadd.f32 %v1123, %v1124
  %v1126 = vsel %vm741, %v1035, 0.0
  %v1127 = vadd.f32 %v1125, %v1126
  %v1128 = vsel %vm741, %v1036, 0.0
  %v1129 = vadd.f32 %v1127, %v1128
  %v1130 = vsel %vm741, %v1037, 0.0
  %v1131 = vadd.f32 %v1129, %v1130
  %v1132 = vsel %vm741, %v1038, 0.0
  %v1133 = vadd.f32 %v1131, %v1132
  %v1134 = vsel %vm741, %v1039, 0.0
  %v1135 = vadd.f32 %v1133, %v1134
  %v1136 = vsel %vm741, %v1040, 0.0
  %v1137 = vadd.f32 %v1135, %v1136
  %v1138 = vrot.slane %v1137, 4
  %v1139 = vadd.f32 %v1137, %v1138
  %v1140 = vrot.slane %v1139, 2
  %v1141 = vadd.f32 %v1139, %v1140
  %v1142 = vrot.slane %v1141, 1
  %v1143 = vadd.f32 %v1141, %v1142
  %vm1144 = vcmask 1040384
  %v1145 = vsel %vm1144, %v844, %v1143
  %v1146 = vmul.f32 %v1145, 0.0051020407
  %v1147 = vpack.c.bf16 %v1146, %v1146
  %v1148 = vld [vmem:[%s4] sm:$0xf]
  %v1149 = vld [vmem:[%s4 + $0x4] sm:$0xf]
  %v1150 = vld [vmem:[%s4 + $0x8] sm:$0xf]
  %v1151 = vld [vmem:[%s4 + $0xc] sm:$0xf]
  %v1152 = vld [vmem:[%s5] sm:$0x1]
  %v1154 = vperm.slane %v1152, 0
  %v1160 = vunpack.c.l.b16 %v1148
  %v1161 = vunpack.c.l.b16 %v1149
  %v1162 = vunpack.c.l.b16 %v1150
  %v1163 = vunpack.c.l.b16 %v1151
  %v1164 = vpack.c.b16 %v1161, %v1160
  %v1165 = vpack.c.b16 %v1163, %v1162
  %v1169 = vsel %vm741, %v1147, 0
  %1171 = vmatpush.bf16.msra.mxu0 0
  %1172 = vmatpush.bf16.msra.mxu0 0
  %1173 = vmatpush.bf16.msra.mxu0 0
  %1174 = vmatpush.bf16.msra.mxu0 0
  %1175 = vmatpush.bf16.msra.mxu0 0
  %1176 = vmatpush.bf16.msra.mxu0 0
  %1177 = vmatpush.bf16.msra.mxu0 %v1165
  %1178 = vmatpush.bf16.msra.mxu0 %v1164
  %1179 = vmatmul.bf16.gmra.mxu0 %v1169
  %v1180 = vpop.f32.mrf.mxu0
  %v1181 = vadd.f32 %v1154, %v1180
  %v1182 = vpop.f32.mrf.mxu0
  %1183 = vdwg.mxu0
  %v1184 = vmax.f32 %v1181, 0.0
  %v1185 = vlaneseq
  %v1186 = vand.u32 %v1185, 127
  %v1187 = vld [vmem:[%s0] sm:$0xff]
  %v1188 = vld [vmem:[%s0 + $0x8] sm:$0xff]
  %1189 = vset.pattern.permute.xlu0 0
  %1190 = vperm.xlu0 %1189, %v1187
  %v1191 = vpop.permute.xlu0 %1190
  %1192 = vset.pattern.permute.xlu0 0
  %1193 = vperm.xlu0 %1192, %v1188
  %v1194 = vpop.permute.xlu0 %1193
  %vm1195 = vcmp.eq.s32.totalorder %v1186, %v1191
  %vm1196 = vcmp.eq.s32.totalorder %v1186, %v1194
  %v1197 = vsel %vm1195, 1, 0
  %v1198 = vsel %vm1196, 1, 0
  %v1199 = vcvt.s32.f32 %v1197
  %v1200 = vcvt.s32.f32 %v1198
  %v1201 = vpack.c.bf16 %v1200, %v1199
  %v1202 = vld [vmem:[%s6] sm:$0xf]
  %v1203 = vld [vmem:[%s6 + $0x4] sm:$0xf]
  %v1204 = vld [vmem:[%s6 + $0x8] sm:$0xf]
  %v1205 = vld [vmem:[%s6 + $0xc] sm:$0xf]
  %v1206 = vld [vmem:[%s6 + $0x10] sm:$0xf]
  %v1207 = vld [vmem:[%s6 + $0x14] sm:$0xf]
  %v1208 = vld [vmem:[%s6 + $0x18] sm:$0xf]
  %v1209 = vld [vmem:[%s6 + $0x1c] sm:$0xf]
  %v1218 = vunpack.c.l.b16 %v1202
  %v1219 = vunpack.c.l.b16 %v1203
  %v1220 = vunpack.c.l.b16 %v1204
  %v1221 = vunpack.c.l.b16 %v1205
  %v1222 = vunpack.c.l.b16 %v1206
  %v1223 = vunpack.c.l.b16 %v1207
  %v1224 = vunpack.c.l.b16 %v1208
  %v1225 = vunpack.c.l.b16 %v1209
  %v1226 = vpack.c.b16 %v1219, %v1218
  %v1227 = vpack.c.b16 %v1221, %v1220
  %v1228 = vpack.c.b16 %v1223, %v1222
  %v1229 = vpack.c.b16 %v1225, %v1224
  %vm1234 = vcmask 523264
  %v1236 = vsel %vm1234, %v1201, 0
  %1238 = vmatpush.bf16.msra.mxu0 0
  %1239 = vmatpush.bf16.msra.mxu0 0
  %1240 = vmatpush.bf16.msra.mxu0 0
  %1241 = vmatpush.bf16.msra.mxu0 0
  %1242 = vmatpush.bf16.msra.mxu0 %v1229
  %1243 = vmatpush.bf16.msra.mxu0 %v1228
  %1244 = vmatpush.bf16.msra.mxu0 %v1227
  %1245 = vmatpush.bf16.msra.mxu0 %v1226
  %1246 = vmatmul.bf16.gmra.mxu0 %v1236
  %v1247 = vpop.f32.mrf.mxu0
  %v1248 = vadd.f32 0.0, %v1247
  %v1249 = vpop.f32.mrf.mxu0
  %v1250 = vadd.f32 0.0, %v1249
  %1251 = vdwg.mxu0
  %vm1254 = vcmask 1041408
  %v1255 = vrot.slane %v1248, 6
  %v1256 = vrot.slane %v1250, 6
  %v1257 = vsel %vm1254, %v1255, %v1256
  %v1261 = vsel %vm1254, %v1184, %v1255
  %v1262 = vpack.c.bf16 %v1257, %v1261
  %v1263 = vpack.c.bf16 %v1256, %v1256
  %v1264 = vld [vmem:[%s7] sm:$0xf]
  %v1265 = vld [vmem:[%s7 + $0x4] sm:$0xf]
  %v1266 = vld [vmem:[%s9] sm:$0x1]
  %v1268 = vperm.slane %v1266, 0
  %v1272 = vunpack.c.l.b16 %v1264
  %v1273 = vunpack.c.l.b16 %v1265
  %v1274 = vpack.c.b16 %v1273, %v1272
  %vm1276 = vcmask 130048
  %v1278 = vsel %vm1276, %v1262, 0
  %v1281 = vsel %vm1276, %v1263, 0
  %1283 = vmatpush.bf16.msra.mxu0 0
  %1284 = vmatpush.bf16.msra.mxu0 0
  %1285 = vmatpush.bf16.msra.mxu0 0
  %1286 = vmatpush.bf16.msra.mxu0 0
  %1287 = vmatpush.bf16.msra.mxu0 0
  %1288 = vmatpush.bf16.msra.mxu0 0
  %1289 = vmatpush.bf16.msra.mxu0 0
  %1290 = vmatpush.bf16.msra.mxu0 %v1274
  %1291 = vmatmul.bf16.gmra.mxu0 %v1278
  %v1292 = vpop.f32.mrf.mxu0
  %v1293 = vadd.f32 %v1268, %v1292
  %v1294 = vpop.f32.mrf.mxu0
  %v1295 = vadd.f32 %v1268, %v1294
  %1296 = vmatmul.bf16.gmra.mxu0 %v1281
  %v1297 = vpop.f32.mrf.mxu0
  %v1298 = vadd.f32 %v1268, %v1297
  %v1299 = vpop.f32.mrf.mxu0
  %1300 = vdwg.mxu0
  %1301 = vst [vmem:[#allocation2] sm:$0xff] %v1293
  %1302 = vst [vmem:[#allocation2 + $0x8] sm:$0xff] %v1295
  %1303 = vst [vmem:[#allocation2 + $0x10] sm:$0x3] %v1298
  %vm1304 = vcmp.ge.s32.totalorder %v1186, 64
  %vm1305 = vcmp.lt.s32.totalorder %v1186, 96
  %vm1306 = vmand %vm1304, %vm1305
  %v1307 = vsel %vm1306, 1.0, 0.5
  %v1308 = vsel %vm1306, 0.0, 0.5
  %v1309 = vld [vmem:[%s8] sm:$0xf]
  %v1310 = vld [vmem:[%s8 + $0x4] sm:$0xf]
  %v1311 = vld [vmem:[%s8 + $0x8] sm:$0xf]
  %v1312 = vld [vmem:[%s8 + $0xc] sm:$0xf]
  %v1313 = vld [vmem:[%s10] sm:$0xf]
  %v1314 = vld [vmem:[%s10 + $0x4] sm:$0xf]
  %v1315 = vld [vmem:[%s10 + $0x8] sm:$0xf]
  %v1316 = vld [vmem:[%s10 + $0xc] sm:$0xf]
  %v1317 = vld [vmem:[%s10 + $0x10] sm:$0xf]
  %v1318 = vld [vmem:[%s10 + $0x14] sm:$0xf]
  %v1319 = vld [vmem:[%s10 + $0x18] sm:$0xf]
  %v1320 = vld [vmem:[%s10 + $0x1c] sm:$0xf]
  %v1321 = vld [vmem:[%s11] sm:$0x1]
  %v1322 = vld [vmem:[#allocation2] sm:$0x3]
  %v1327 = vunpack.c.l.b16 %v1309
  %v1328 = vunpack.c.l.b16 %v1310
  %v1329 = vunpack.c.l.b16 %v1311
  %v1330 = vunpack.c.l.b16 %v1312
  %v1331 = vpack.c.b16 %v1328, %v1327
  %v1332 = vpack.c.b16 %v1330, %v1329
  %v1336 = vsel %vm741, 0, 0
  %1338 = vmatpush.bf16.msra.mxu0 0
  %1339 = vmatpush.bf16.msra.mxu0 0
  %1340 = vmatpush.bf16.msra.mxu0 0
  %1341 = vmatpush.bf16.msra.mxu0 0
  %1342 = vmatpush.bf16.msra.mxu0 0
  %1343 = vmatpush.bf16.msra.mxu0 0
  %1344 = vmatpush.bf16.msra.mxu0 %v1332
  %1345 = vmatpush.bf16.msra.mxu0 %v1331
  %1346 = vmatmul.bf16.gmra.mxu0 %v1336
  %v1347 = vpop.f32.mrf.mxu0
  %v1348 = vadd.f32 0.0, %v1347
  %v1349 = vpop.f32.mrf.mxu0
  %1350 = vdwg.mxu0
  %v1351 = vadd.f32 %v1322, %v1348
  %v1352 = vtanh.pop %v1351
  %v1353 = vmul.f32 %v1307, %v1352
  %v1354 = vadd.f32 %v1353, %v1308
  %v1355 = vmul.f32 %v1354, 0.0
  %1357 = vrot.lane.b32.xlu0 %v1354, 64
  %v1358 = vpop.permute.xlu0 %1357
  %v1360 = vmul.f32 %v1354, %v1358
  %1362 = vrot.lane.b32.xlu0 %v1360, 32
  %v1363 = vpop.permute.xlu0 %1362
  %v1365 = vadd.f32 %v1355, %v1363
  %v1366 = vtanh.pop %v1365
  %1368 = vrot.lane.b32.xlu0 %v1366, 64
  %v1369 = vpop.permute.xlu0 %1368
  %v1371 = vmul.f32 %v1354, %v1369
  %1373 = vrot.lane.b32.xlu0 %v1371, 32
  %v1374 = vpop.permute.xlu0 %1373
  %v1376 = vsel %vm741, %v1374, 0.0
  %v1377 = vpack.c.bf16 %v1376, %v1376
  %v1379 = vperm.slane %v1321, 0
  %v1389 = vunpack.c.l.b16 %v1313
  %v1390 = vunpack.c.l.b16 %v1314
  %v1391 = vunpack.c.l.b16 %v1315
  %v1392 = vunpack.c.l.b16 %v1316
  %v1393 = vunpack.c.l.b16 %v1317
  %v1394 = vunpack.c.l.b16 %v1318
  %v1395 = vunpack.c.l.b16 %v1319
  %v1396 = vunpack.c.l.b16 %v1320
  %v1397 = vpack.c.b16 %v1390, %v1389
  %v1398 = vpack.c.b16 %v1392, %v1391
  %v1399 = vpack.c.b16 %v1394, %v1393
  %v1400 = vpack.c.b16 %v1396, %v1395
  %v1406 = vsel %vm1234, %v1377, 0
  %1408 = vmatpush.bf16.msra.mxu0 0
  %1409 = vmatpush.bf16.msra.mxu0 0
  %1410 = vmatpush.bf16.msra.mxu0 0
  %1411 = vmatpush.bf16.msra.mxu0 0
  %1412 = vmatpush.bf16.msra.mxu0 %v1400
  %1413 = vmatpush.bf16.msra.mxu0 %v1399
  %1414 = vmatpush.bf16.msra.mxu0 %v1398
  %1415 = vmatpush.bf16.msra.mxu0 %v1397
  %1416 = vmatmul.bf16.gmra.mxu0 %v1406
  %v1417 = vpop.f32.mrf.mxu0
  %v1418 = vadd.f32 %v1379, %v1417
  %v1419 = vpop.f32.mrf.mxu0
  %1420 = vdwg.mxu0
  %v1421 = vtanh.pop %v1418
  %v1422 = vmul.f32 %v1307, %v1421
  %v1423 = vadd.f32 %v1422, %v1308
  %v1424 = vmul.f32 %v1423, 0.0
  %1426 = vrot.lane.b32.xlu0 %v1423, 64
  %v1427 = vpop.permute.xlu0 %1426
  %v1429 = vmul.f32 %v1423, %v1427
  %1431 = vrot.lane.b32.xlu0 %v1429, 32
  %v1432 = vpop.permute.xlu0 %1431
  %v1434 = vadd.f32 %v1424, %v1432
  %v1435 = vtanh.pop %v1434
  %1437 = vrot.lane.b32.xlu0 %v1435, 64
  %v1438 = vpop.permute.xlu0 %1437
  %v1440 = vmul.f32 %v1423, %v1438
  %1442 = vrot.lane.b32.xlu0 %v1440, 32
  %v1443 = vpop.permute.xlu0 %1442
  %vm1445 = vcmask 254976
  %1446 = vst.msk [vmem:[#allocation3] sm:$0x3] %vm1445, %v1443
  %v1447 = vld [vmem:[#allocation2 + $0x2] sm:$0x3]
  %v1448 = vpack.c.bf16 %v1371, %v1371
  %1450 = vrot.lane.b32.xlu0 %v1448, 32
  %v1451 = vpop.permute.xlu0 %1450
  %v1453 = vsel %vm741, %v1451, 0
  %1455 = vmatpush.bf16.msra.mxu0 0
  %1456 = vmatpush.bf16.msra.mxu0 0
  %1457 = vmatpush.bf16.msra.mxu0 0
  %1458 = vmatpush.bf16.msra.mxu0 0
  %1459 = vmatpush.bf16.msra.mxu0 0
  %1460 = vmatpush.bf16.msra.mxu0 0
  %1461 = vmatpush.bf16.msra.mxu0 %v1332
  %1462 = vmatpush.bf16.msra.mxu0 %v1331
  %1463 = vmatmul.bf16.gmra.mxu0 %v1453
  %v1464 = vpop.f32.mrf.mxu0
  %v1465 = vadd.f32 0.0, %v1464
  %v1466 = vpop.f32.mrf.mxu0
  %1467 = vdwg.mxu0
  %v1468 = vadd.f32 %v1447, %v1465
  %v1469 = vtanh.pop %v1468
  %v1470 = vmul.f32 %v1307, %v1469
  %v1471 = vadd.f32 %v1470, %v1308
  %v1472 = vmul.f32 %v1471, %v1365
  %1474 = vrot.lane.b32.xlu0 %v1471, 64
  %v1475 = vpop.permute.xlu0 %1474
  %v1477 = vmul.f32 %v1471, %v1475
  %1479 = vrot.lane.b32.xlu0 %v1477, 32
  %v1480 = vpop.permute.xlu0 %1479
  %v1482 = vadd.f32 %v1472, %v1480
  %v1483 = vtanh.pop %v1482
  %1485 = vrot.lane.b32.xlu0 %v1483, 64
  %v1486 = vpop.permute.xlu0 %1485
  %v1488 = vmul.f32 %v1471, %v1486
  %1490 = vrot.lane.b32.xlu0 %v1488, 32
  %v1491 = vpop.permute.xlu0 %1490
  %1493 = vrot.lane.b32.xlu0 %v1440, 64
  %v1494 = vpop.permute.xlu0 %1493
  %v1496 = vsel %vm741, %v1491, %v1494
  %v1497 = vpack.c.bf16 %v1496, %v1496
  %v1499 = vsel %vm1234, %v1497, 0
  %1501 = vmatpush.bf16.msra.mxu0 0
  %1502 = vmatpush.bf16.msra.mxu0 0
  %1503 = vmatpush.bf16.msra.mxu0 0
  %1504 = vmatpush.bf16.msra.mxu0 0
  %1505 = vmatpush.bf16.msra.mxu0 %v1400
  %1506 = vmatpush.bf16.msra.mxu0 %v1399
  %1507 = vmatpush.bf16.msra.mxu0 %v1398
  %1508 = vmatpush.bf16.msra.mxu0 %v1397
  %1509 = vmatmul.bf16.gmra.mxu0 %v1499
  %v1510 = vpop.f32.mrf.mxu0
  %v1511 = vadd.f32 %v1379, %v1510
  %v1512 = vpop.f32.mrf.mxu0
  %1513 = vdwg.mxu0
  %v1514 = vtanh.pop %v1511
  %v1515 = vmul.f32 %v1307, %v1514
  %v1516 = vadd.f32 %v1515, %v1308
  %v1517 = vmul.f32 %v1516, %v1434
  %1519 = vrot.lane.b32.xlu0 %v1516, 64
  %v1520 = vpop.permute.xlu0 %1519
  %v1522 = vmul.f32 %v1516, %v1520
  %1524 = vrot.lane.b32.xlu0 %v1522, 32
  %v1525 = vpop.permute.xlu0 %1524
  %v1527 = vadd.f32 %v1517, %v1525
  %v1528 = vtanh.pop %v1527
  %1530 = vrot.lane.b32.xlu0 %v1528, 64
  %v1531 = vpop.permute.xlu0 %1530
  %v1533 = vmul.f32 %v1516, %v1531
  %1535 = vrot.lane.b32.xlu0 %v1533, 32
  %v1536 = vpop.permute.xlu0 %1535
  %1538 = vst.msk [vmem:[#allocation3 + $0x2] sm:$0x3] %vm1445, %v1536
  %v1539 = vld [vmem:[#allocation2 + $0x4] sm:$0x3]
  %v1540 = vpack.c.bf16 %v1488, %v1488
  %1542 = vrot.lane.b32.xlu0 %v1540, 32
  %v1543 = vpop.permute.xlu0 %1542
  %v1545 = vsel %vm741, %v1543, 0
  %1547 = vmatpush.bf16.msra.mxu0 0
  %1548 = vmatpush.bf16.msra.mxu0 0
  %1549 = vmatpush.bf16.msra.mxu0 0
  %1550 = vmatpush.bf16.msra.mxu0 0
  %1551 = vmatpush.bf16.msra.mxu0 0
  %1552 = vmatpush.bf16.msra.mxu0 0
  %1553 = vmatpush.bf16.msra.mxu0 %v1332
  %1554 = vmatpush.bf16.msra.mxu0 %v1331
  %1555 = vmatmul.bf16.gmra.mxu0 %v1545
  %v1556 = vpop.f32.mrf.mxu0
  %v1557 = vadd.f32 0.0, %v1556
  %v1558 = vpop.f32.mrf.mxu0
  %1559 = vdwg.mxu0
  %v1560 = vadd.f32 %v1539, %v1557
  %v1561 = vtanh.pop %v1560
  %v1562 = vmul.f32 %v1307, %v1561
  %v1563 = vadd.f32 %v1562, %v1308
  %v1564 = vmul.f32 %v1563, %v1482
  %1566 = vrot.lane.b32.xlu0 %v1563, 64
  %v1567 = vpop.permute.xlu0 %1566
  %v1569 = vmul.f32 %v1563, %v1567
  %1571 = vrot.lane.b32.xlu0 %v1569, 32
  %v1572 = vpop.permute.xlu0 %1571
  %v1574 = vadd.f32 %v1564, %v1572
  %v1575 = vtanh.pop %v1574
  %1577 = vrot.lane.b32.xlu0 %v1575, 64
  %v1578 = vpop.permute.xlu0 %1577
  %v1580 = vmul.f32 %v1563, %v1578
  %1582 = vrot.lane.b32.xlu0 %v1580, 32
  %v1583 = vpop.permute.xlu0 %1582
  %1585 = vrot.lane.b32.xlu0 %v1533, 64
  %v1586 = vpop.permute.xlu0 %1585
  %v1588 = vsel %vm741, %v1583, %v1586
  %v1589 = vpack.c.bf16 %v1588, %v1588
  %v1591 = vsel %vm1234, %v1589, 0
  %1593 = vmatpush.bf16.msra.mxu0 0
  %1594 = vmatpush.bf16.msra.mxu0 0
  %1595 = vmatpush.bf16.msra.mxu0 0
  %1596 = vmatpush.bf16.msra.mxu0 0
  %1597 = vmatpush.bf16.msra.mxu0 %v1400
  %1598 = vmatpush.bf16.msra.mxu0 %v1399
  %1599 = vmatpush.bf16.msra.mxu0 %v1398
  %1600 = vmatpush.bf16.msra.mxu0 %v1397
  %1601 = vmatmul.bf16.gmra.mxu0 %v1591
  %v1602 = vpop.f32.mrf.mxu0
  %v1603 = vadd.f32 %v1379, %v1602
  %v1604 = vpop.f32.mrf.mxu0
  %1605 = vdwg.mxu0
  %v1606 = vtanh.pop %v1603
  %v1607 = vmul.f32 %v1307, %v1606
  %v1608 = vadd.f32 %v1607, %v1308
  %v1609 = vmul.f32 %v1608, %v1527
  %1611 = vrot.lane.b32.xlu0 %v1608, 64
  %v1612 = vpop.permute.xlu0 %1611
  %v1614 = vmul.f32 %v1608, %v1612
  %1616 = vrot.lane.b32.xlu0 %v1614, 32
  %v1617 = vpop.permute.xlu0 %1616
  %v1619 = vadd.f32 %v1609, %v1617
  %v1620 = vtanh.pop %v1619
  %1622 = vrot.lane.b32.xlu0 %v1620, 64
  %v1623 = vpop.permute.xlu0 %1622
  %v1625 = vmul.f32 %v1608, %v1623
  %1627 = vrot.lane.b32.xlu0 %v1625, 32
  %v1628 = vpop.permute.xlu0 %1627
  %1630 = vst.msk [vmem:[#allocation3 + $0x4] sm:$0x3] %vm1445, %v1628
  %v1631 = vld [vmem:[#allocation2 + $0x6] sm:$0x3]
  %v1632 = vpack.c.bf16 %v1580, %v1580
  %1634 = vrot.lane.b32.xlu0 %v1632, 32
  %v1635 = vpop.permute.xlu0 %1634
  %v1637 = vsel %vm741, %v1635, 0
  %1639 = vmatpush.bf16.msra.mxu0 0
  %1640 = vmatpush.bf16.msra.mxu0 0
  %1641 = vmatpush.bf16.msra.mxu0 0
  %1642 = vmatpush.bf16.msra.mxu0 0
  %1643 = vmatpush.bf16.msra.mxu0 0
  %1644 = vmatpush.bf16.msra.mxu0 0
  %1645 = vmatpush.bf16.msra.mxu0 %v1332
  %1646 = vmatpush.bf16.msra.mxu0 %v1331
  %1647 = vmatmul.bf16.gmra.mxu0 %v1637
  %v1648 = vpop.f32.mrf.mxu0
  %v1649 = vadd.f32 0.0, %v1648
  %v1650 = vpop.f32.mrf.mxu0
  %1651 = vdwg.mxu0
  %v1652 = vadd.f32 %v1631, %v1649
  %v1653 = vtanh.pop %v1652
  %v1654 = vmul.f32 %v1307, %v1653
  %v1655 = vadd.f32 %v1654, %v1308
  %v1656 = vmul.f32 %v1655, %v1574
  %1658 = vrot.lane.b32.xlu0 %v1655, 64
  %v1659 = vpop.permute.xlu0 %1658
  %v1661 = vmul.f32 %v1655, %v1659
  %1663 = vrot.lane.b32.xlu0 %v1661, 32
  %v1664 = vpop.permute.xlu0 %1663
  %v1666 = vadd.f32 %v1656, %v1664
  %v1667 = vtanh.pop %v1666
  %1669 = vrot.lane.b32.xlu0 %v1667, 64
  %v1670 = vpop.permute.xlu0 %1669
  %v1672 = vmul.f32 %v1655, %v1670
  %1674 = vrot.lane.b32.xlu0 %v1672, 32
  %v1675 = vpop.permute.xlu0 %1674
  %1677 = vrot.lane.b32.xlu0 %v1625, 64
  %v1678 = vpop.permute.xlu0 %1677
  %v1680 = vsel %vm741, %v1675, %v1678
  %v1681 = vpack.c.bf16 %v1680, %v1680
  %v1683 = vsel %vm1234, %v1681, 0
  %1685 = vmatpush.bf16.msra.mxu0 0
  %1686 = vmatpush.bf16.msra.mxu0 0
  %1687 = vmatpush.bf16.msra.mxu0 0
  %1688 = vmatpush.bf16.msra.mxu0 0
  %1689 = vmatpush.bf16.msra.mxu0 %v1400
  %1690 = vmatpush.bf16.msra.mxu0 %v1399
  %1691 = vmatpush.bf16.msra.mxu0 %v1398
  %1692 = vmatpush.bf16.msra.mxu0 %v1397
  %1693 = vmatmul.bf16.gmra.mxu0 %v1683
  %v1694 = vpop.f32.mrf.mxu0
  %v1695 = vadd.f32 %v1379, %v1694
  %v1696 = vpop.f32.mrf.mxu0
  %1697 = vdwg.mxu0
  %v1698 = vtanh.pop %v1695
  %v1699 = vmul.f32 %v1307, %v1698
  %v1700 = vadd.f32 %v1699, %v1308
  %v1701 = vmul.f32 %v1700, %v1619
  %1703 = vrot.lane.b32.xlu0 %v1700, 64
  %v1704 = vpop.permute.xlu0 %1703
  %v1706 = vmul.f32 %v1700, %v1704
  %1708 = vrot.lane.b32.xlu0 %v1706, 32
  %v1709 = vpop.permute.xlu0 %1708
  %v1711 = vadd.f32 %v1701, %v1709
  %v1712 = vtanh.pop %v1711
  %1714 = vrot.lane.b32.xlu0 %v1712, 64
  %v1715 = vpop.permute.xlu0 %1714
  %v1717 = vmul.f32 %v1700, %v1715
  %1719 = vrot.lane.b32.xlu0 %v1717, 32
  %v1720 = vpop.permute.xlu0 %1719
  %1722 = vst.msk [vmem:[#allocation3 + $0x6] sm:$0x3] %vm1445, %v1720
  %v1723 = vld [vmem:[#allocation2 + $0x8] sm:$0x3]
  %v1724 = vpack.c.bf16 %v1672, %v1672
  %1726 = vrot.lane.b32.xlu0 %v1724, 32
  %v1727 = vpop.permute.xlu0 %1726
  %v1729 = vsel %vm741, %v1727, 0
  %1731 = vmatpush.bf16.msra.mxu0 0
  %1732 = vmatpush.bf16.msra.mxu0 0
  %1733 = vmatpush.bf16.msra.mxu0 0
  %1734 = vmatpush.bf16.msra.mxu0 0
  %1735 = vmatpush.bf16.msra.mxu0 0
  %1736 = vmatpush.bf16.msra.mxu0 0
  %1737 = vmatpush.bf16.msra.mxu0 %v1332
  %1738 = vmatpush.bf16.msra.mxu0 %v1331
  %1739 = vmatmul.bf16.gmra.mxu0 %v1729
  %v1740 = vpop.f32.mrf.mxu0
  %v1741 = vadd.f32 0.0, %v1740
  %v1742 = vpop.f32.mrf.mxu0
  %1743 = vdwg.mxu0
  %v1744 = vadd.f32 %v1723, %v1741
  %v1745 = vtanh.pop %v1744
  %v1746 = vmul.f32 %v1307, %v1745
  %v1747 = vadd.f32 %v1746, %v1308
  %v1748 = vmul.f32 %v1747, %v1666
  %1750 = vrot.lane.b32.xlu0 %v1747, 64
  %v1751 = vpop.permute.xlu0 %1750
  %v1753 = vmul.f32 %v1747, %v1751
  %1755 = vrot.lane.b32.xlu0 %v1753, 32
  %v1756 = vpop.permute.xlu0 %1755
  %v1758 = vadd.f32 %v1748, %v1756
  %v1759 = vtanh.pop %v1758
  %1761 = vrot.lane.b32.xlu0 %v1759, 64
  %v1762 = vpop.permute.xlu0 %1761
  %v1764 = vmul.f32 %v1747, %v1762
  %1766 = vrot.lane.b32.xlu0 %v1764, 32
  %v1767 = vpop.permute.xlu0 %1766
  %1769 = vrot.lane.b32.xlu0 %v1717, 64
  %v1770 = vpop.permute.xlu0 %1769
  %v1772 = vsel %vm741, %v1767, %v1770
  %v1773 = vpack.c.bf16 %v1772, %v1772
  %v1775 = vsel %vm1234, %v1773, 0
  %1777 = vmatpush.bf16.msra.mxu0 0
  %1778 = vmatpush.bf16.msra.mxu0 0
  %1779 = vmatpush.bf16.msra.mxu0 0
  %1780 = vmatpush.bf16.msra.mxu0 0
  %1781 = vmatpush.bf16.msra.mxu0 %v1400
  %1782 = vmatpush.bf16.msra.mxu0 %v1399
  %1783 = vmatpush.bf16.msra.mxu0 %v1398
  %1784 = vmatpush.bf16.msra.mxu0 %v1397
  %1785 = vmatmul.bf16.gmra.mxu0 %v1775
  %v1786 = vpop.f32.mrf.mxu0
  %v1787 = vadd.f32 %v1379, %v1786
  %v1788 = vpop.f32.mrf.mxu0
  %1789 = vdwg.mxu0
  %v1790 = vtanh.pop %v1787
  %v1791 = vmul.f32 %v1307, %v1790
  %v1792 = vadd.f32 %v1791, %v1308
  %v1793 = vmul.f32 %v1792, %v1711
  %1795 = vrot.lane.b32.xlu0 %v1792, 64
  %v1796 = vpop.permute.xlu0 %1795
  %v1798 = vmul.f32 %v1792, %v1796
  %1800 = vrot.lane.b32.xlu0 %v1798, 32
  %v1801 = vpop.permute.xlu0 %1800
  %v1803 = vadd.f32 %v1793, %v1801
  %v1804 = vtanh.pop %v1803
  %1806 = vrot.lane.b32.xlu0 %v1804, 64
  %v1807 = vpop.permute.xlu0 %1806
  %v1809 = vmul.f32 %v1792, %v1807
  %1811 = vrot.lane.b32.xlu0 %v1809, 32
  %v1812 = vpop.permute.xlu0 %1811
  %1814 = vst.msk [vmem:[#allocation3 + $0x8] sm:$0x3] %vm1445, %v1812
  %v1815 = vld [vmem:[#allocation2 + $0xa] sm:$0x3]
  %v1816 = vpack.c.bf16 %v1764, %v1764
  %1818 = vrot.lane.b32.xlu0 %v1816, 32
  %v1819 = vpop.permute.xlu0 %1818
  %v1821 = vsel %vm741, %v1819, 0
  %1823 = vmatpush.bf16.msra.mxu0 0
  %1824 = vmatpush.bf16.msra.mxu0 0
  %1825 = vmatpush.bf16.msra.mxu0 0
  %1826 = vmatpush.bf16.msra.mxu0 0
  %1827 = vmatpush.bf16.msra.mxu0 0
  %1828 = vmatpush.bf16.msra.mxu0 0
  %1829 = vmatpush.bf16.msra.mxu0 %v1332
  %1830 = vmatpush.bf16.msra.mxu0 %v1331
  %1831 = vmatmul.bf16.gmra.mxu0 %v1821
  %v1832 = vpop.f32.mrf.mxu0
  %v1833 = vadd.f32 0.0, %v1832
  %v1834 = vpop.f32.mrf.mxu0
  %1835 = vdwg.mxu0
  %v1836 = vadd.f32 %v1815, %v1833
  %v1837 = vtanh.pop %v1836
  %v1838 = vmul.f32 %v1307, %v1837
  %v1839 = vadd.f32 %v1838, %v1308
  %v1840 = vmul.f32 %v1839, %v1758
  %1842 = vrot.lane.b32.xlu0 %v1839, 64
  %v1843 = vpop.permute.xlu0 %1842
  %v1845 = vmul.f32 %v1839, %v1843
  %1847 = vrot.lane.b32.xlu0 %v1845, 32
  %v1848 = vpop.permute.xlu0 %1847
  %v1850 = vadd.f32 %v1840, %v1848
  %v1851 = vtanh.pop %v1850
  %1853 = vrot.lane.b32.xlu0 %v1851, 64
  %v1854 = vpop.permute.xlu0 %1853
  %v1856 = vmul.f32 %v1839, %v1854
  %1858 = vrot.lane.b32.xlu0 %v1856, 32
  %v1859 = vpop.permute.xlu0 %1858
  %1861 = vrot.lane.b32.xlu0 %v1809, 64
  %v1862 = vpop.permute.xlu0 %1861
  %v1864 = vsel %vm741, %v1859, %v1862
  %v1865 = vpack.c.bf16 %v1864, %v1864
  %v1867 = vsel %vm1234, %v1865, 0
  %1869 = vmatpush.bf16.msra.mxu0 0
  %1870 = vmatpush.bf16.msra.mxu0 0
  %1871 = vmatpush.bf16.msra.mxu0 0
  %1872 = vmatpush.bf16.msra.mxu0 0
  %1873 = vmatpush.bf16.msra.mxu0 %v1400
  %1874 = vmatpush.bf16.msra.mxu0 %v1399
  %1875 = vmatpush.bf16.msra.mxu0 %v1398
  %1876 = vmatpush.bf16.msra.mxu0 %v1397
  %1877 = vmatmul.bf16.gmra.mxu0 %v1867
  %v1878 = vpop.f32.mrf.mxu0
  %v1879 = vadd.f32 %v1379, %v1878
  %v1880 = vpop.f32.mrf.mxu0
  %1881 = vdwg.mxu0
  %v1882 = vtanh.pop %v1879
  %v1883 = vmul.f32 %v1307, %v1882
  %v1884 = vadd.f32 %v1883, %v1308
  %v1885 = vmul.f32 %v1884, %v1803
  %1887 = vrot.lane.b32.xlu0 %v1884, 64
  %v1888 = vpop.permute.xlu0 %1887
  %v1890 = vmul.f32 %v1884, %v1888
  %1892 = vrot.lane.b32.xlu0 %v1890, 32
  %v1893 = vpop.permute.xlu0 %1892
  %v1895 = vadd.f32 %v1885, %v1893
  %v1896 = vtanh.pop %v1895
  %1898 = vrot.lane.b32.xlu0 %v1896, 64
  %v1899 = vpop.permute.xlu0 %1898
  %v1901 = vmul.f32 %v1884, %v1899
  %1903 = vrot.lane.b32.xlu0 %v1901, 32
  %v1904 = vpop.permute.xlu0 %1903
  %1906 = vst.msk [vmem:[#allocation3 + $0xa] sm:$0x3] %vm1445, %v1904
  %v1907 = vld [vmem:[#allocation2 + $0xc] sm:$0x3]
  %v1908 = vpack.c.bf16 %v1856, %v1856
  %1910 = vrot.lane.b32.xlu0 %v1908, 32
  %v1911 = vpop.permute.xlu0 %1910
  %v1913 = vsel %vm741, %v1911, 0
  %1915 = vmatpush.bf16.msra.mxu0 0
  %1916 = vmatpush.bf16.msra.mxu0 0
  %1917 = vmatpush.bf16.msra.mxu0 0
  %1918 = vmatpush.bf16.msra.mxu0 0
  %1919 = vmatpush.bf16.msra.mxu0 0
  %1920 = vmatpush.bf16.msra.mxu0 0
  %1921 = vmatpush.bf16.msra.mxu0 %v1332
  %1922 = vmatpush.bf16.msra.mxu0 %v1331
  %1923 = vmatmul.bf16.gmra.mxu0 %v1913
  %v1924 = vpop.f32.mrf.mxu0
  %v1925 = vadd.f32 0.0, %v1924
  %v1926 = vpop.f32.mrf.mxu0
  %1927 = vdwg.mxu0
  %v1928 = vadd.f32 %v1907, %v1925
  %v1929 = vtanh.pop %v1928
  %v1930 = vmul.f32 %v1307, %v1929
  %v1931 = vadd.f32 %v1930, %v1308
  %v1932 = vmul.f32 %v1931, %v1850
  %1934 = vrot.lane.b32.xlu0 %v1931, 64
  %v1935 = vpop.permute.xlu0 %1934
  %v1937 = vmul.f32 %v1931, %v1935
  %1939 = vrot.lane.b32.xlu0 %v1937, 32
  %v1940 = vpop.permute.xlu0 %1939
  %v1942 = vadd.f32 %v1932, %v1940
  %v1943 = vtanh.pop %v1942
  %1945 = vrot.lane.b32.xlu0 %v1943, 64
  %v1946 = vpop.permute.xlu0 %1945
  %v1948 = vmul.f32 %v1931, %v1946
  %1950 = vrot.lane.b32.xlu0 %v1948, 32
  %v1951 = vpop.permute.xlu0 %1950
  %1953 = vrot.lane.b32.xlu0 %v1901, 64
  %v1954 = vpop.permute.xlu0 %1953
  %v1956 = vsel %vm741, %v1951, %v1954
  %v1957 = vpack.c.bf16 %v1956, %v1956
  %v1959 = vsel %vm1234, %v1957, 0
  %1961 = vmatpush.bf16.msra.mxu0 0
  %1962 = vmatpush.bf16.msra.mxu0 0
  %1963 = vmatpush.bf16.msra.mxu0 0
  %1964 = vmatpush.bf16.msra.mxu0 0
  %1965 = vmatpush.bf16.msra.mxu0 %v1400
  %1966 = vmatpush.bf16.msra.mxu0 %v1399
  %1967 = vmatpush.bf16.msra.mxu0 %v1398
  %1968 = vmatpush.bf16.msra.mxu0 %v1397
  %1969 = vmatmul.bf16.gmra.mxu0 %v1959
  %v1970 = vpop.f32.mrf.mxu0
  %v1971 = vadd.f32 %v1379, %v1970
  %v1972 = vpop.f32.mrf.mxu0
  %1973 = vdwg.mxu0
  %v1974 = vtanh.pop %v1971
  %v1975 = vmul.f32 %v1307, %v1974
  %v1976 = vadd.f32 %v1975, %v1308
  %v1977 = vmul.f32 %v1976, %v1895
  %1979 = vrot.lane.b32.xlu0 %v1976, 64
  %v1980 = vpop.permute.xlu0 %1979
  %v1982 = vmul.f32 %v1976, %v1980
  %1984 = vrot.lane.b32.xlu0 %v1982, 32
  %v1985 = vpop.permute.xlu0 %1984
  %v1987 = vadd.f32 %v1977, %v1985
  %v1988 = vtanh.pop %v1987
  %1990 = vrot.lane.b32.xlu0 %v1988, 64
  %v1991 = vpop.permute.xlu0 %1990
  %v1993 = vmul.f32 %v1976, %v1991
  %1995 = vrot.lane.b32.xlu0 %v1993, 32
  %v1996 = vpop.permute.xlu0 %1995
  %1998 = vst.msk [vmem:[#allocation3 + $0xc] sm:$0x3] %vm1445, %v1996
  %v1999 = vld [vmem:[#allocation2 + $0xe] sm:$0x3]
  %v2000 = vpack.c.bf16 %v1948, %v1948
  %2002 = vrot.lane.b32.xlu0 %v2000, 32
  %v2003 = vpop.permute.xlu0 %2002
  %v2005 = vsel %vm741, %v2003, 0
  %2007 = vmatpush.bf16.msra.mxu0 0
  %2008 = vmatpush.bf16.msra.mxu0 0
  %2009 = vmatpush.bf16.msra.mxu0 0
  %2010 = vmatpush.bf16.msra.mxu0 0
  %2011 = vmatpush.bf16.msra.mxu0 0
  %2012 = vmatpush.bf16.msra.mxu0 0
  %2013 = vmatpush.bf16.msra.mxu0 %v1332
  %2014 = vmatpush.bf16.msra.mxu0 %v1331
  %2015 = vmatmul.bf16.gmra.mxu0 %v2005
  %v2016 = vpop.f32.mrf.mxu0
  %v2017 = vadd.f32 0.0, %v2016
  %v2018 = vpop.f32.mrf.mxu0
  %2019 = vdwg.mxu0
  %v2020 = vadd.f32 %v1999, %v2017
  %v2021 = vtanh.pop %v2020
  %v2022 = vmul.f32 %v1307, %v2021
  %v2023 = vadd.f32 %v2022, %v1308
  %v2024 = vmul.f32 %v2023, %v1942
  %2026 = vrot.lane.b32.xlu0 %v2023, 64
  %v2027 = vpop.permute.xlu0 %2026
  %v2029 = vmul.f32 %v2023, %v2027
  %2031 = vrot.lane.b32.xlu0 %v2029, 32
  %v2032 = vpop.permute.xlu0 %2031
  %v2034 = vadd.f32 %v2024, %v2032
  %v2035 = vtanh.pop %v2034
  %2037 = vrot.lane.b32.xlu0 %v2035, 64
  %v2038 = vpop.permute.xlu0 %2037
  %v2040 = vmul.f32 %v2023, %v2038
  %2042 = vrot.lane.b32.xlu0 %v2040, 32
  %v2043 = vpop.permute.xlu0 %2042
  %2045 = vrot.lane.b32.xlu0 %v1993, 64
  %v2046 = vpop.permute.xlu0 %2045
  %v2048 = vsel %vm741, %v2043, %v2046
  %v2049 = vpack.c.bf16 %v2048, %v2048
  %v2051 = vsel %vm1234, %v2049, 0
  %2053 = vmatpush.bf16.msra.mxu0 0
  %2054 = vmatpush.bf16.msra.mxu0 0
  %2055 = vmatpush.bf16.msra.mxu0 0
  %2056 = vmatpush.bf16.msra.mxu0 0
  %2057 = vmatpush.bf16.msra.mxu0 %v1400
  %2058 = vmatpush.bf16.msra.mxu0 %v1399
  %2059 = vmatpush.bf16.msra.mxu0 %v1398
  %2060 = vmatpush.bf16.msra.mxu0 %v1397
  %2061 = vmatmul.bf16.gmra.mxu0 %v2051
  %v2062 = vpop.f32.mrf.mxu0
  %v2063 = vadd.f32 %v1379, %v2062
  %v2064 = vpop.f32.mrf.mxu0
  %2065 = vdwg.mxu0
  %v2066 = vtanh.pop %v2063
  %v2067 = vmul.f32 %v1307, %v2066
  %v2068 = vadd.f32 %v2067, %v1308
  %v2069 = vmul.f32 %v2068, %v1987
  %2071 = vrot.lane.b32.xlu0 %v2068, 64
  %v2072 = vpop.permute.xlu0 %2071
  %v2074 = vmul.f32 %v2068, %v2072
  %2076 = vrot.lane.b32.xlu0 %v2074, 32
  %v2077 = vpop.permute.xlu0 %2076
  %v2079 = vadd.f32 %v2069, %v2077
  %v2080 = vtanh.pop %v2079
  %2082 = vrot.lane.b32.xlu0 %v2080, 64
  %v2083 = vpop.permute.xlu0 %2082
  %v2085 = vmul.f32 %v2068, %v2083
  %2087 = vrot.lane.b32.xlu0 %v2085, 32
  %v2088 = vpop.permute.xlu0 %2087
  %2090 = vst.msk [vmem:[#allocation3 + $0xe] sm:$0x3] %vm1445, %v2088
  %v2091 = vld [vmem:[#allocation2 + $0x10] sm:$0x3]
  %v2092 = vpack.c.bf16 %v2040, %v2040
  %2094 = vrot.lane.b32.xlu0 %v2092, 32
  %v2095 = vpop.permute.xlu0 %2094
  %v2097 = vsel %vm741, %v2095, 0
  %2099 = vmatpush.bf16.msra.mxu0 0
  %2100 = vmatpush.bf16.msra.mxu0 0
  %2101 = vmatpush.bf16.msra.mxu0 0
  %2102 = vmatpush.bf16.msra.mxu0 0
  %2103 = vmatpush.bf16.msra.mxu0 0
  %2104 = vmatpush.bf16.msra.mxu0 0
  %2105 = vmatpush.bf16.msra.mxu0 %v1332
  %2106 = vmatpush.bf16.msra.mxu0 %v1331
  %2107 = vmatmul.bf16.gmra.mxu0 %v2097
  %v2108 = vpop.f32.mrf.mxu0
  %v2109 = vadd.f32 0.0, %v2108
  %v2110 = vpop.f32.mrf.mxu0
  %2111 = vdwg.mxu0
  %v2112 = vadd.f32 %v2091, %v2109
  %v2113 = vtanh.pop %v2112
  %v2114 = vmul.f32 %v1307, %v2113
  %v2115 = vadd.f32 %v2114, %v1308
  %v2116 = vmul.f32 %v2115, %v2034
  %2118 = vrot.lane.b32.xlu0 %v2115, 64
  %v2119 = vpop.permute.xlu0 %2118
  %v2121 = vmul.f32 %v2115, %v2119
  %2123 = vrot.lane.b32.xlu0 %v2121, 32
  %v2124 = vpop.permute.xlu0 %2123
  %v2126 = vadd.f32 %v2116, %v2124
  %v2127 = vtanh.pop %v2126
  %2129 = vrot.lane.b32.xlu0 %v2127, 64
  %v2130 = vpop.permute.xlu0 %2129
  %v2132 = vmul.f32 %v2115, %v2130
  %2134 = vrot.lane.b32.xlu0 %v2132, 32
  %v2135 = vpop.permute.xlu0 %2134
  %2137 = vrot.lane.b32.xlu0 %v2085, 64
  %v2138 = vpop.permute.xlu0 %2137
  %v2140 = vsel %vm741, %v2135, %v2138
  %v2141 = vpack.c.bf16 %v2140, %v2140
  %v2143 = vsel %vm1234, %v2141, 0
  %2145 = vmatpush.bf16.msra.mxu0 0
  %2146 = vmatpush.bf16.msra.mxu0 0
  %2147 = vmatpush.bf16.msra.mxu0 0
  %2148 = vmatpush.bf16.msra.mxu0 0
  %2149 = vmatpush.bf16.msra.mxu0 %v1400
  %2150 = vmatpush.bf16.msra.mxu0 %v1399
  %2151 = vmatpush.bf16.msra.mxu0 %v1398
  %2152 = vmatpush.bf16.msra.mxu0 %v1397
  %2153 = vmatmul.bf16.gmra.mxu0 %v2143
  %v2154 = vpop.f32.mrf.mxu0
  %v2155 = vadd.f32 %v1379, %v2154
  %v2156 = vpop.f32.mrf.mxu0
  %2157 = vdwg.mxu0
  %v2158 = vtanh.pop %v2155
  %v2159 = vmul.f32 %v1307, %v2158
  %v2160 = vadd.f32 %v2159, %v1308
  %v2161 = vmul.f32 %v2160, %v2079
  %2163 = vrot.lane.b32.xlu0 %v2160, 64
  %v2164 = vpop.permute.xlu0 %2163
  %v2166 = vmul.f32 %v2160, %v2164
  %2168 = vrot.lane.b32.xlu0 %v2166, 32
  %v2169 = vpop.permute.xlu0 %2168
  %v2171 = vadd.f32 %v2161, %v2169
  %v2172 = vtanh.pop %v2171
  %2174 = vrot.lane.b32.xlu0 %v2172, 64
  %v2175 = vpop.permute.xlu0 %2174
  %v2177 = vmul.f32 %v2160, %v2175
  %2179 = vrot.lane.b32.xlu0 %v2177, 32
  %v2180 = vpop.permute.xlu0 %2179
  %2182 = vst.msk [vmem:[#allocation3 + $0x10] sm:$0x3] %vm1445, %v2180
  %v2183 = vld [vmem:[#allocation3] sm:$0xff]
  %v2184 = vld [vmem:[#allocation3 + $0x8] sm:$0xff]
  %v2185 = vld [vmem:[#allocation3 + $0x10] sm:$0x3]
  %v2186 = vpack.c.bf16 %v2184, %v2183
  %v2187 = vpack.c.bf16 %v2185, %v2185
  %v2188 = vld [vmem:[%s12] sm:$0xf]
  %v2189 = vld [vmem:[%s12 + $0x4] sm:$0xf]
  %v2190 = vld [vmem:[%s12 + $0x8] sm:$0xf]
  %v2191 = vld [vmem:[%s12 + $0xc] sm:$0xf]
  %v2192 = vld [vmem:[%s13] sm:$0x1]
  %v2194 = vperm.slane %v2192, 0
  %v2200 = vunpack.c.l.b16 %v2188
  %v2201 = vunpack.c.l.b16 %v2189
  %v2202 = vunpack.c.l.b16 %v2190
  %v2203 = vunpack.c.l.b16 %v2191
  %v2204 = vpack.c.b16 %v2201, %v2200
  %v2205 = vpack.c.b16 %v2203, %v2202
  %v2209 = vsel %vm741, %v2186, 0
  %v2212 = vsel %vm741, %v2187, 0
  %2214 = vmatpush.bf16.msra.mxu0 0
  %2215 = vmatpush.bf16.msra.mxu0 0
  %2216 = vmatpush.bf16.msra.mxu0 0
  %2217 = vmatpush.bf16.msra.mxu0 0
  %2218 = vmatpush.bf16.msra.mxu0 0
  %2219 = vmatpush.bf16.msra.mxu0 0
  %2220 = vmatpush.bf16.msra.mxu0 %v2205
  %2221 = vmatpush.bf16.msra.mxu0 %v2204
  %2222 = vmatmul.bf16.gmra.mxu0 %v2209
  %v2223 = vpop.f32.mrf.mxu0
  %v2224 = vadd.f32 %v2194, %v2223
  %v2225 = vpop.f32.mrf.mxu0
  %v2226 = vadd.f32 %v2194, %v2225
  %2227 = vmatmul.bf16.gmra.mxu0 %v2212
  %v2228 = vpop.f32.mrf.mxu0
  %v2229 = vadd.f32 %v2194, %v2228
  %v2230 = vpop.f32.mrf.mxu0
  %2231 = vdwg.mxu0
  %2232 = vst [vmem:[%s14] sm:$0xff] %v2224
  %2233 = vst [vmem:[%s14 + $0x8] sm:$0xff] %v2226
  %2234 = vst [vmem:[%s14 + $0x10] sm:$0x3] %v2229
  // Predicated region
  $region58: #{cnn_to_rnn_forward.1} parent=0 // pred_check
    _
  $region59: #{cnn_to_rnn_forward.1} parent=0 // pred_check_branch
    %2236 = sbr.rel (0) target = $region61
  $region60: #{cnn_to_rnn_forward.1} parent=0 // pred_region
    _
  $region61: #{cnn_to_rnn_forward.1} parent=0 // pred_fallthru
    _
  // Predicated region
  $region62: #{cnn_to_rnn_forward.1} parent=0 // pred_check
    _
  $region63: #{cnn_to_rnn_forward.1} parent=0 // pred_check_branch
    %2238 = sbr.rel (0) target = $region65
  $region64: #{cnn_to_rnn_forward.1} parent=0 // pred_region
    _
  $region65: #{cnn_to_rnn_forward.1} parent=0 // pred_fallthru
    _

</llo_original>
